<compile_context>
chip_gen: v5e
topology: v5e:2x2
jax: 0.10.0
libtpu: 0.0.40
codegen_flags: <defaults>
</compile_context>

<pallas_src>
import jax
import jax.numpy as jnp
import numpy as np
from jax import lax
from jax.experimental import pallas as pl
from jax.experimental.pallas import tpu as pltpu

LANE = 128


def _round_up(x, m):
    return (x + m - 1) // m * m


def _segment_offsets(widths):
    """Lane offsets for packed segments, each padded to a 128-lane boundary."""
    offs, cur = [], 0
    for w in widths:
        offs.append(cur)
        cur += _round_up(w, LANE)
    return offs, cur


# ----------------------------------------------------------------------------
# One-time parameter packing (hoisted out of the decode loop).
# ----------------------------------------------------------------------------
def prepare_params(params):
    H = params["W1_w"].shape[0]
    O = params["out_w"].shape[0]
    f32 = jnp.float32

    # Weight slab: all pieces pre-transposed to (in=H, out) so the kernel does
    # x @ W.  W1 and combine_q are packed adjacently -> single fused q matmul.
    w_names = ("w1cq", "w2", "cwc", "wih", "whh", "out")
    w_widths = (2 * H, H, H, 3 * H, 3 * H, O)
    w_offs, w_total = _segment_offsets(w_widths)
    w_off = dict(zip(w_names, w_offs))

    b_names = ("b1", "b2", "cb", "bih", "bhh", "outb", "vb", "vw")
    b_widths = (H, H, H, 3 * H, 3 * H, O, 1, H)
    b_offs, b_total = _segment_offsets(b_widths)
    b_off = dict(zip(b_names, b_offs))

    w_pieces = {
        "w1cq": jnp.concatenate(
            [params["W1_w"].T, params["comb_w"][:, :H].T], axis=1),  # (H, 2H)
        "w2": params["W2_w"].T,                 # (H, H)
        "cwc": params["comb_w"][:, H:].T,       # (H, H)  combine, context part
        "wih": params["gru_wih"].T,             # (H, 3H) gate order r|z|n
        "whh": params["gru_whh"].T,             # (H, 3H)
        "out": params["out_w"].T,               # (H, O)
    }
    b_pieces = {
        "b1": params["W1_b"].reshape(1, H),
        "b2": params["W2_b"].reshape(1, H),
        "cb": params["comb_b"].reshape(1, H),
        "bih": params["gru_bih"].reshape(1, 3 * H),
        "bhh": params["gru_bhh"].reshape(1, 3 * H),
        "outb": params["out_b"].reshape(1, O),
        "vb": params["V_b"].reshape(1, 1),
        "vw": params["V_w"].reshape(1, H),      # V kept as a row
    }

    w_slab = jnp.zeros((H, w_total), f32)
    for name, width in zip(w_names, w_widths):
        w_slab = w_slab.at[:, w_off[name]:w_off[name] + width].set(
            w_pieces[name].astype(f32))
    b_slab = jnp.zeros((1, b_total), f32)
    for name, width in zip(b_names, b_widths):
        b_slab = b_slab.at[:, b_off[name]:b_off[name] + width].set(
            b_pieces[name].astype(f32))

    return {
        "embedding": params["embedding"].astype(f32),
        "w_slab": w_slab, "b_slab": b_slab,
        "w_off": w_off, "b_off": b_off,
        "H": H, "O": O,
    }


# ----------------------------------------------------------------------------
# Pallas kernel: full T-step decode in one invocation (grid=()).
# ----------------------------------------------------------------------------
def _make_decoder_kernel(H, O, L, T, w_off, b_off):
    def kernel(q_ref, vals_ref, w_ref, b_ref, h0_ref,
               logp_ref, attn_ref, hout_ref, hs_ref):
        f32 = jnp.float32

        def w(name, width):           # static slice of the resident weight slab
            o = w_off[name]
            return w_ref[:, o:o + width]

        def b(name, width):           # static slice of the resident bias slab
            o = b_off[name]
            return b_ref[:, o:o + width]

        q_all = q_ref[...]            # (T, H) embedded queries (dropout = id, eval)
        vals = vals_ref[...]          # (L, H) encoder values

        # ---- batched, h-independent prepass over all T decode steps -------
        # fused q projection: q_all @ [W1 | combine_q] -> (T, 2H)
        qproj = jnp.dot(q_all, w("w1cq", 2 * H), preferred_element_type=f32)
        w1q = qproj[:, :H] + b("b1", H)            # (T, H)  W1(query) + b1
        qcomb = qproj[:, H:2 * H]                  # (T, H)  combine_q(query)

        # W2(values) + b2 (decode-step invariant)
        w2v = jnp.dot(vals, w("w2", H), preferred_element_type=f32) + b("b2", H)  # (L,H)

        # Bahdanau score for all steps: (T, L)
        th = jnp.tanh(w1q[:, None, :] + w2v[None, :, :])       # (T, L, H)
        vw = b("vw", H).reshape(1, 1, H)
        score = jnp.sum(th * vw, axis=-1) + b("vb", 1)          # (T, L)

        # softmax over L (lane axis)
        m = jnp.max(score, axis=-1, keepdims=True)
        e = jnp.exp(score - m)
        s = jnp.sum(e, axis=-1, keepdims=True)
        inv = pl.reciprocal(s, approx=True)       # EUP slot
        inv = inv * (2.0 - s * inv)                # one Newton step -> ~f32 accurate
        aw = e * inv                               # (T, L) attention weights

        ctx = jnp.dot(aw, vals, preferred_element_type=f32)     # (T, H) contexts

        # attention_combine(cat(query, context)) + ReLU, batched over T
        x = qcomb + jnp.dot(ctx, w("cwc", H), preferred_element_type=f32) + b("cb", H)
        x = jnp.maximum(x, 0.0)                                  # (T, H)

        # GRU input gates for all steps (h-independent): (T, 3H)
        gi_all = (jnp.dot(x, w("wih", 3 * H), preferred_element_type=f32)
                  + b("bih", 3 * H))

        # ---- serial GRU recurrence (the only true per-step dependence) -----
        whh = w("whh", 3 * H)
        bhh = b("bhh", 3 * H)
        h = h0_ref[...]                                          # (1, H)
        for t in range(T):                                       # static, fully unrolled
            gi = gi_all[t:t + 1, :]                              # (1, 3H) static slice
            gh = jnp.dot(h, whh, preferred_element_type=f32) + bhh
            r = jax.nn.sigmoid(gi[:, :H] + gh[:, :H])
            z = jax.nn.sigmoid(gi[:, H:2 * H] + gh[:, H:2 * H])
            n = jnp.tanh(gi[:, 2 * H:] + r * gh[:, 2 * H:])
            h = (1.0 - z) * n + z * h                            # (1, H)
            hs_ref[pl.ds(t, 1), :] = h                           # collect row t

        # ---- batched output projection + log-softmax, one-shot stores ------
        hs = hs_ref[...]                                         # (T, H)
        logits = jnp.dot(hs, w("out", O), preferred_element_type=f32) + b("outb", O)
        lmax = jnp.max(logits, axis=-1, keepdims=True)
        shifted = logits - lmax
        lse = jnp.log(jnp.sum(jnp.exp(shifted), axis=-1, keepdims=True))

        attn_ref[...] = aw
        logp_ref[...] = shifted - lse
        hout_ref[...] = h

    return kernel


# ----------------------------------------------------------------------------
# Multi-step decode in ONE pallas_call (no grid; everything VMEM-resident).
# ----------------------------------------------------------------------------
def attention_decoder_decode(tokens, hidden, values, prepared):
    """Runs T decoder steps (each identical to the module's forward) in one kernel.

    tokens: (T,) int32 input token per step; hidden: (1,1,H); values: (L,H).
    Returns (logp (T,O), final hidden (1,1,H), attention weights (T,L)).
    """
    H, O = prepared["H"], prepared["O"]
    L = values.shape[0]
    T = int(tokens.shape[0])

    # embedding row gather stays as JAX glue (done once per decode call)
    q_all = prepared["embedding"][tokens].reshape(T, H).astype(jnp.float32)
    h0 = hidden.reshape(1, H).astype(jnp.float32)
    values = values.astype(jnp.float32)

    kernel = _make_decoder_kernel(H, O, L, T, prepared["w_off"], prepared["b_off"])

    def vmem_spec():
        return pl.BlockSpec(memory_space=pltpu.MemorySpace.VMEM)

    logp, attn, h_out = pl.pallas_call(
        kernel,
        out_shape=(
            jax.ShapeDtypeStruct((T, O), jnp.float32),   # per-step log-probs
            jax.ShapeDtypeStruct((T, L), jnp.float32),   # per-step attention
            jax.ShapeDtypeStruct((1, H), jnp.float32),   # final hidden
        ),
        in_specs=[vmem_spec(), vmem_spec(), vmem_spec(), vmem_spec(), vmem_spec()],
        out_specs=(vmem_spec(), vmem_spec(), vmem_spec()),
        scratch_shapes=[pltpu.VMEM((T, H), jnp.float32)],   # collected h_new rows
    )(q_all, values, prepared["w_slab"], prepared["b_slab"], h0)

    return logp, h_out.reshape(1, 1, H), attn


def attention_decoder_forward(input_idx, hidden, values, prepared):
    """Single-step forward matching the PyTorch module signature (T=1 decode)."""
    tokens = jnp.asarray(input_idx, jnp.int32).reshape(1)
    logp, h_new, attn = attention_decoder_decode(tokens, hidden, values, prepared)
    return logp, h_new, attn


# ----------------------------------------------------------------------------
# Pure-JAX reference (mirrors the PyTorch forward) for correctness checks.
# ----------------------------------------------------------------------------
def reference_forward(input_idx, hidden, values, params):
    H = params["W1_w"].shape[0]
    query = params["embedding"][input_idx].reshape(1, H)
    queries = jnp.broadcast_to(query, (values.shape[0], H))
    score = jnp.tanh(queries @ params["W1_w"].T + params["W1_b"]
                     + values @ params["W2_w"].T + params["W2_b"]) @ params["V_w"].T + params["V_b"]
    aw = jax.nn.softmax(score, axis=0)           # (L, 1)
    aw_t = aw.T                                  # (1, L)
    ctx = aw_t @ values                          # (1, H)
    x = jnp.concatenate([query, ctx], axis=1) @ params["comb_w"].T + params["comb_b"]
    x = jax.nn.relu(x)
    h = hidden.reshape(1, H)
    gi = x @ params["gru_wih"].T + params["gru_bih"]
    gh = h @ params["gru_whh"].T + params["gru_bhh"]
    i_r, i_z, i_n = gi[:, :H], gi[:, H:2 * H], gi[:, 2 * H:]
    h_r, h_z, h_n = gh[:, :H], gh[:, H:2 * H], gh[:, 2 * H:]
    r = jax.nn.sigmoid(i_r + h_r)
    z = jax.nn.sigmoid(i_z + h_z)
    n = jnp.tanh(i_n + r * h_n)
    h_new = (1.0 - z) * n + z * h
    logits = h_new @ params["out_w"].T + params["out_b"]
    logp = jax.nn.log_softmax(logits, axis=1)
    return logp, h_new.reshape(1, 1, H), aw_t


if __name__ == "__main__":
    HIDDEN = 32          # hidden_size
    OUTPUT = 16          # output_size (vocab)
    MAX_LEN = 10         # max_length (default)
    STEPS = 6            # decode steps run inside one pallas_call

    key = jax.random.PRNGKey(0)
    ks = jax.random.split(key, 16)

    def init(k, shape, scale=0.1):
        return (scale * jax.random.normal(k, shape)).astype(jnp.float32)

    params = {
        "embedding": init(ks[0], (OUTPUT, HIDDEN)),
        "W1_w": init(ks[1], (HIDDEN, HIDDEN)), "W1_b": init(ks[2], (HIDDEN,)),
        "W2_w": init(ks[3], (HIDDEN, HIDDEN)), "W2_b": init(ks[4], (HIDDEN,)),
        "V_w": init(ks[5], (1, HIDDEN)),       "V_b": init(ks[6], (1,)),
        "comb_w": init(ks[7], (HIDDEN, 2 * HIDDEN)), "comb_b": init(ks[8], (HIDDEN,)),
        "gru_wih": init(ks[9], (3 * HIDDEN, HIDDEN)),
        "gru_whh": init(ks[10], (3 * HIDDEN, HIDDEN)),
        "gru_bih": init(ks[11], (3 * HIDDEN,)),
        "gru_bhh": init(ks[12], (3 * HIDDEN,)),
        "out_w": init(ks[13], (OUTPUT, HIDDEN)), "out_b": init(ks[14], (OUTPUT,)),
    }

    tokens = jnp.array([3, 1, 7, 0, 12, 5], dtype=jnp.int32)        # teacher-forced inputs
    hidden = jnp.zeros((1, 1, HIDDEN), dtype=jnp.float32)           # initHidden()
    values = init(ks[15], (MAX_LEN, HIDDEN), scale=1.0)             # encoder outputs

    prepared = prepare_params(params)   # one-time weight packing / transposes

    # Multi-step decode: STEPS module-forwards fused into one pallas_call.
    logp, h_new, attn = attention_decoder_decode(tokens, hidden, values, prepared)
    jax.block_until_ready((logp, h_new, attn))

    # Reference: apply the pure-JAX module forward sequentially.
    r_logps, r_attns = [], []
    r_h = hidden
    for i in range(STEPS):
        r_logp_i, r_h, r_attn_i = reference_forward(tokens[i], r_h, values, params)
        r_logps.append(r_logp_i)
        r_attns.append(r_attn_i)
    r_logp = jnp.concatenate(r_logps, axis=0)
    r_attn = jnp.concatenate(r_attns, axis=0)

    np.testing.assert_allclose(np.asarray(logp), np.asarray(r_logp), rtol=1e-3, atol=1e-4)
    np.testing.assert_allclose(np.asarray(h_new), np.asarray(r_h), rtol=1e-3, atol=1e-4)
    np.testing.assert_allclose(np.asarray(attn), np.asarray(r_attn), rtol=1e-3, atol=1e-4)

    # Single-step check with the module's original signature.
    logp1, h1, attn1 = attention_decoder_forward(tokens[0], hidden, values, prepared)
    s_logp, s_h, s_attn = reference_forward(tokens[0], hidden, values, params)
    np.testing.assert_allclose(np.asarray(logp1), np.asarray(s_logp), rtol=1e-3, atol=1e-4)
    np.testing.assert_allclose(np.asarray(h1), np.asarray(s_h), rtol=1e-3, atol=1e-4)
    np.testing.assert_allclose(np.asarray(attn1), np.asarray(s_attn), rtol=1e-3, atol=1e-4)

    print("KERNEL_OK")
</pallas_src>

<mosaic_0001>
module attributes {stable_mosaic.version = 11 : i64} {
  func.func @kernel(%arg0: memref<6x32xf32, #tpu.memory_space<vmem>>, %arg1: memref<10x32xf32, #tpu.memory_space<vmem>>, %arg2: memref<32x768xf32, #tpu.memory_space<vmem>>, %arg3: memref<1x1024xf32, #tpu.memory_space<vmem>>, %arg4: memref<1x32xf32, #tpu.memory_space<vmem>>, %arg5: memref<6x16xf32, #tpu.memory_space<vmem>>, %arg6: memref<6x10xf32, #tpu.memory_space<vmem>>, %arg7: memref<1x32xf32, #tpu.memory_space<vmem>>, %arg8: memref<6x32xf32, #tpu.memory_space<vmem>>) attributes {dimension_semantics = [], scalar_prefetch = 0 : i64, scratch_operands = 1 : i64, tpu.core_type = #tpu.core_type<tc>} {
    %c0 = arith.constant 0 : index
    %c0_0 = arith.constant 0 : index
    %0 = vector.load %arg0[%c0, %c0_0] : memref<6x32xf32, #tpu.memory_space<vmem>>, vector<6x32xf32>
    %c0_1 = arith.constant 0 : index
    %c0_2 = arith.constant 0 : index
    %1 = vector.load %arg1[%c0_1, %c0_2] : memref<10x32xf32, #tpu.memory_space<vmem>>, vector<10x32xf32>
    %c0_3 = arith.constant 0 : index
    %c0_4 = arith.constant 0 : index
    %2 = vector.load %arg2[%c0_3, %c0_4] : memref<32x768xf32, #tpu.memory_space<vmem>>, vector<32x64xf32>
    %cst = arith.constant dense<0.000000e+00> : vector<6x64xf32>
    %3 = tpu.matmul %0, %2, %cst {dimension_numbers = #tpu.dot_dimension_numbers<[1], [0], [0], [1], [0, 0, 1, 1], [], []>} : vector<6x32xf32>, vector<32x64xf32>, vector<6x64xf32> -> vector<6x64xf32>
    %4 = vector.extract_strided_slice %3 {offsets = [0, 0], sizes = [6, 32], strides = [1, 1]} : vector<6x64xf32> to vector<6x32xf32>
    %c0_5 = arith.constant 0 : index
    %c0_6 = arith.constant 0 : index
    %5 = vector.load %arg3[%c0_5, %c0_6] : memref<1x1024xf32, #tpu.memory_space<vmem>>, vector<1x32xf32>
    %6 = vector.broadcast %5 : vector<1x32xf32> to vector<6x32xf32>
    %7 = arith.addf %4, %6 : vector<6x32xf32>
    %8 = vector.extract_strided_slice %3 {offsets = [0, 32], sizes = [6, 32], strides = [1, 1]} : vector<6x64xf32> to vector<6x32xf32>
    %c0_7 = arith.constant 0 : index
    %c128 = arith.constant 128 : index
    %9 = vector.load %arg2[%c0_7, %c128] : memref<32x768xf32, #tpu.memory_space<vmem>>, vector<32x32xf32>
    %cst_8 = arith.constant dense<0.000000e+00> : vector<10x32xf32>
    %10 = tpu.matmul %1, %9, %cst_8 {dimension_numbers = #tpu.dot_dimension_numbers<[1], [0], [0], [1], [0, 0, 1, 1], [], []>} : vector<10x32xf32>, vector<32x32xf32>, vector<10x32xf32> -> vector<10x32xf32>
    %c0_9 = arith.constant 0 : index
    %c128_10 = arith.constant 128 : index
    %11 = vector.load %arg3[%c0_9, %c128_10] : memref<1x1024xf32, #tpu.memory_space<vmem>>, vector<1x32xf32>
    %12 = vector.broadcast %11 : vector<1x32xf32> to vector<10x32xf32>
    %13 = arith.addf %10, %12 : vector<10x32xf32>
    %14 = vector.shape_cast %7 : vector<6x32xf32> to vector<6x1x32xf32>
    %15 = vector.shape_cast %13 : vector<10x32xf32> to vector<1x10x32xf32>
    %16 = vector.broadcast %14 : vector<6x1x32xf32> to vector<6x10x32xf32>
    %17 = vector.broadcast %15 : vector<1x10x32xf32> to vector<6x10x32xf32>
    %18 = arith.addf %16, %17 : vector<6x10x32xf32>
    %19 = math.tanh %18 : vector<6x10x32xf32>
    %c0_11 = arith.constant 0 : index
    %c896 = arith.constant 896 : index
    %20 = vector.load %arg3[%c0_11, %c896] : memref<1x1024xf32, #tpu.memory_space<vmem>>, vector<1x32xf32>
    %21 = vector.shape_cast %20 : vector<1x32xf32> to vector<1x1x32xf32>
    %22 = vector.broadcast %21 : vector<1x1x32xf32> to vector<6x10x32xf32>
    %23 = arith.mulf %19, %22 : vector<6x10x32xf32>
    %cst_12 = arith.constant dense<0.000000e+00> : vector<6x10xf32>
    %24 = vector.multi_reduction <add>, %23, %cst_12 [2] : vector<6x10x32xf32> to vector<6x10xf32>
    %c0_13 = arith.constant 0 : index
    %c768 = arith.constant 768 : index
    %25 = vector.load %arg3[%c0_13, %c768] : memref<1x1024xf32, #tpu.memory_space<vmem>>, vector<1x1xf32>
    %26 = vector.broadcast %25 : vector<1x1xf32> to vector<6x10xf32>
    %27 = arith.addf %24, %26 : vector<6x10xf32>
    %cst_14 = arith.constant dense<0xFF800000> : vector<6xf32>
    %28 = vector.multi_reduction <maximumf>, %27, %cst_14 [1] : vector<6x10xf32> to vector<6xf32>
    %29 = vector.shape_cast %28 : vector<6xf32> to vector<6x1xf32>
    %30 = vector.broadcast %29 : vector<6x1xf32> to vector<6x10xf32>
    %31 = arith.subf %27, %30 : vector<6x10xf32>
    %32 = math.exp %31 : vector<6x10xf32>
    %cst_15 = arith.constant dense<0.000000e+00> : vector<6xf32>
    %33 = vector.multi_reduction <add>, %32, %cst_15 [1] : vector<6x10xf32> to vector<6xf32>
    %34 = vector.shape_cast %33 : vector<6xf32> to vector<6x1xf32>
    %35 = tpu.reciprocal %34 {approx = true} : vector<6x1xf32> -> vector<6x1xf32>
    %36 = arith.mulf %34, %35 : vector<6x1xf32>
    %cst_16 = arith.constant 2.000000e+00 : f32
    %37 = vector.broadcast %cst_16 : f32 to vector<6x1xf32>
    %38 = arith.subf %37, %36 : vector<6x1xf32>
    %39 = arith.mulf %35, %38 : vector<6x1xf32>
    %40 = vector.broadcast %39 : vector<6x1xf32> to vector<6x10xf32>
    %41 = arith.mulf %32, %40 : vector<6x10xf32>
    %cst_17 = arith.constant dense<0.000000e+00> : vector<6x32xf32>
    %42 = tpu.matmul %41, %1, %cst_17 {dimension_numbers = #tpu.dot_dimension_numbers<[1], [0], [0], [1], [0, 0, 1, 1], [], []>} : vector<6x10xf32>, vector<10x32xf32>, vector<6x32xf32> -> vector<6x32xf32>
    %c0_18 = arith.constant 0 : index
    %c256 = arith.constant 256 : index
    %43 = vector.load %arg2[%c0_18, %c256] : memref<32x768xf32, #tpu.memory_space<vmem>>, vector<32x32xf32>
    %cst_19 = arith.constant dense<0.000000e+00> : vector<6x32xf32>
    %44 = tpu.matmul %42, %43, %cst_19 {dimension_numbers = #tpu.dot_dimension_numbers<[1], [0], [0], [1], [0, 0, 1, 1], [], []>} : vector<6x32xf32>, vector<32x32xf32>, vector<6x32xf32> -> vector<6x32xf32>
    %45 = arith.addf %8, %44 : vector<6x32xf32>
    %c0_20 = arith.constant 0 : index
    %c256_21 = arith.constant 256 : index
    %46 = vector.load %arg3[%c0_20, %c256_21] : memref<1x1024xf32, #tpu.memory_space<vmem>>, vector<1x32xf32>
    %47 = vector.broadcast %46 : vector<1x32xf32> to vector<6x32xf32>
    %48 = arith.addf %45, %47 : vector<6x32xf32>
    %cst_22 = arith.constant 0.000000e+00 : f32
    %49 = vector.broadcast %cst_22 : f32 to vector<6x32xf32>
    %50 = arith.maximumf %48, %49 : vector<6x32xf32>
    %c0_23 = arith.constant 0 : index
    %c384 = arith.constant 384 : index
    %51 = vector.load %arg2[%c0_23, %c384] : memref<32x768xf32, #tpu.memory_space<vmem>>, vector<32x96xf32>
    %cst_24 = arith.constant dense<0.000000e+00> : vector<6x96xf32>
    %52 = tpu.matmul %50, %51, %cst_24 {dimension_numbers = #tpu.dot_dimension_numbers<[1], [0], [0], [1], [0, 0, 1, 1], [], []>} : vector<6x32xf32>, vector<32x96xf32>, vector<6x96xf32> -> vector<6x96xf32>
    %c0_25 = arith.constant 0 : index
    %c384_26 = arith.constant 384 : index
    %53 = vector.load %arg3[%c0_25, %c384_26] : memref<1x1024xf32, #tpu.memory_space<vmem>>, vector<1x96xf32>
    %54 = vector.broadcast %53 : vector<1x96xf32> to vector<6x96xf32>
    %55 = arith.addf %52, %54 : vector<6x96xf32>
    %c0_27 = arith.constant 0 : index
    %c512 = arith.constant 512 : index
    %56 = vector.load %arg2[%c0_27, %c512] : memref<32x768xf32, #tpu.memory_space<vmem>>, vector<32x96xf32>
    %c0_28 = arith.constant 0 : index
    %c512_29 = arith.constant 512 : index
    %57 = vector.load %arg3[%c0_28, %c512_29] : memref<1x1024xf32, #tpu.memory_space<vmem>>, vector<1x96xf32>
    %c0_30 = arith.constant 0 : index
    %c0_31 = arith.constant 0 : index
    %58 = vector.load %arg4[%c0_30, %c0_31] : memref<1x32xf32, #tpu.memory_space<vmem>>, vector<1x32xf32>
    %59 = vector.extract_strided_slice %55 {offsets = [0, 0], sizes = [1, 96], strides = [1, 1]} : vector<6x96xf32> to vector<1x96xf32>
    %cst_32 = arith.constant dense<0.000000e+00> : vector<1x96xf32>
    %60 = tpu.matmul %58, %56, %cst_32 {dimension_numbers = #tpu.dot_dimension_numbers<[1], [0], [0], [1], [0, 0, 1, 1], [], []>} : vector<1x32xf32>, vector<32x96xf32>, vector<1x96xf32> -> vector<1x96xf32>
    %61 = arith.addf %60, %57 : vector<1x96xf32>
    %62 = vector.extract_strided_slice %59 {offsets = [0, 0], sizes = [1, 32], strides = [1, 1]} : vector<1x96xf32> to vector<1x32xf32>
    %63 = vector.extract_strided_slice %61 {offsets = [0, 0], sizes = [1, 32], strides = [1, 1]} : vector<1x96xf32> to vector<1x32xf32>
    %64 = arith.addf %62, %63 : vector<1x32xf32>
    %65 = arith.negf %64 : vector<1x32xf32>
    %66 = math.exp %65 : vector<1x32xf32>
    %cst_33 = arith.constant 1.000000e+00 : f32
    %67 = vector.broadcast %cst_33 : f32 to vector<1x32xf32>
    %68 = arith.addf %67, %66 : vector<1x32xf32>
    %69 = arith.divf %67, %68 : vector<1x32xf32>
    %70 = vector.extract_strided_slice %59 {offsets = [0, 32], sizes = [1, 32], strides = [1, 1]} : vector<1x96xf32> to vector<1x32xf32>
    %71 = vector.extract_strided_slice %61 {offsets = [0, 32], sizes = [1, 32], strides = [1, 1]} : vector<1x96xf32> to vector<1x32xf32>
    %72 = arith.addf %70, %71 : vector<1x32xf32>
    %73 = arith.negf %72 : vector<1x32xf32>
    %74 = math.exp %73 : vector<1x32xf32>
    %cst_34 = arith.constant 1.000000e+00 : f32
    %75 = vector.broadcast %cst_34 : f32 to vector<1x32xf32>
    %76 = arith.addf %75, %74 : vector<1x32xf32>
    %77 = arith.divf %75, %76 : vector<1x32xf32>
    %78 = vector.extract_strided_slice %59 {offsets = [0, 64], sizes = [1, 32], strides = [1, 1]} : vector<1x96xf32> to vector<1x32xf32>
    %79 = vector.extract_strided_slice %61 {offsets = [0, 64], sizes = [1, 32], strides = [1, 1]} : vector<1x96xf32> to vector<1x32xf32>
    %80 = arith.mulf %69, %79 : vector<1x32xf32>
    %81 = arith.addf %78, %80 : vector<1x32xf32>
    %82 = math.tanh %81 : vector<1x32xf32>
    %cst_35 = arith.constant 1.000000e+00 : f32
    %83 = vector.broadcast %cst_35 : f32 to vector<1x32xf32>
    %84 = arith.subf %83, %77 : vector<1x32xf32>
    %85 = arith.mulf %84, %82 : vector<1x32xf32>
    %86 = arith.mulf %77, %58 : vector<1x32xf32>
    %87 = arith.addf %85, %86 : vector<1x32xf32>
    %c0_36 = arith.constant 0 : index
    %c0_37 = arith.constant 0 : index
    %88 = vector.load %arg8[%c0_36, %c0_37] : memref<6x32xf32, #tpu.memory_space<vmem>>, vector<1x32xf32>
    tpu.vector_store %arg8[%c0_36, %c0_37], %87 {strides = array<i32>} : memref<6x32xf32, #tpu.memory_space<vmem>>, vector<1x32xf32>,
    %89 = vector.extract_strided_slice %55 {offsets = [1, 0], sizes = [1, 96], strides = [1, 1]} : vector<6x96xf32> to vector<1x96xf32>
    %cst_38 = arith.constant dense<0.000000e+00> : vector<1x96xf32>
    %90 = tpu.matmul %87, %56, %cst_38 {dimension_numbers = #tpu.dot_dimension_numbers<[1], [0], [0], [1], [0, 0, 1, 1], [], []>} : vector<1x32xf32>, vector<32x96xf32>, vector<1x96xf32> -> vector<1x96xf32>
    %91 = arith.addf %90, %57 : vector<1x96xf32>
    %92 = vector.extract_strided_slice %89 {offsets = [0, 0], sizes = [1, 32], strides = [1, 1]} : vector<1x96xf32> to vector<1x32xf32>
    %93 = vector.extract_strided_slice %91 {offsets = [0, 0], sizes = [1, 32], strides = [1, 1]} : vector<1x96xf32> to vector<1x32xf32>
    %94 = arith.addf %92, %93 : vector<1x32xf32>
    %95 = arith.negf %94 : vector<1x32xf32>
    %96 = math.exp %95 : vector<1x32xf32>
    %cst_39 = arith.constant 1.000000e+00 : f32
    %97 = vector.broadcast %cst_39 : f32 to vector<1x32xf32>
    %98 = arith.addf %97, %96 : vector<1x32xf32>
    %99 = arith.divf %97, %98 : vector<1x32xf32>
    %100 = vector.extract_strided_slice %89 {offsets = [0, 32], sizes = [1, 32], strides = [1, 1]} : vector<1x96xf32> to vector<1x32xf32>
    %101 = vector.extract_strided_slice %91 {offsets = [0, 32], sizes = [1, 32], strides = [1, 1]} : vector<1x96xf32> to vector<1x32xf32>
    %102 = arith.addf %100, %101 : vector<1x32xf32>
    %103 = arith.negf %102 : vector<1x32xf32>
    %104 = math.exp %103 : vector<1x32xf32>
    %cst_40 = arith.constant 1.000000e+00 : f32
    %105 = vector.broadcast %cst_40 : f32 to vector<1x32xf32>
    %106 = arith.addf %105, %104 : vector<1x32xf32>
    %107 = arith.divf %105, %106 : vector<1x32xf32>
    %108 = vector.extract_strided_slice %89 {offsets = [0, 64], sizes = [1, 32], strides = [1, 1]} : vector<1x96xf32> to vector<1x32xf32>
    %109 = vector.extract_strided_slice %91 {offsets = [0, 64], sizes = [1, 32], strides = [1, 1]} : vector<1x96xf32> to vector<1x32xf32>
    %110 = arith.mulf %99, %109 : vector<1x32xf32>
    %111 = arith.addf %108, %110 : vector<1x32xf32>
    %112 = math.tanh %111 : vector<1x32xf32>
    %cst_41 = arith.constant 1.000000e+00 : f32
    %113 = vector.broadcast %cst_41 : f32 to vector<1x32xf32>
    %114 = arith.subf %113, %107 : vector<1x32xf32>
    %115 = arith.mulf %114, %112 : vector<1x32xf32>
    %116 = arith.mulf %107, %87 : vector<1x32xf32>
    %117 = arith.addf %115, %116 : vector<1x32xf32>
    %c1 = arith.constant 1 : index
    %c0_42 = arith.constant 0 : index
    %118 = vector.load %arg8[%c1, %c0_42] : memref<6x32xf32, #tpu.memory_space<vmem>>, vector<1x32xf32>
    tpu.vector_store %arg8[%c1, %c0_42], %117 {strides = array<i32>} : memref<6x32xf32, #tpu.memory_space<vmem>>, vector<1x32xf32>,
    %119 = vector.extract_strided_slice %55 {offsets = [2, 0], sizes = [1, 96], strides = [1, 1]} : vector<6x96xf32> to vector<1x96xf32>
    %cst_43 = arith.constant dense<0.000000e+00> : vector<1x96xf32>
    %120 = tpu.matmul %117, %56, %cst_43 {dimension_numbers = #tpu.dot_dimension_numbers<[1], [0], [0], [1], [0, 0, 1, 1], [], []>} : vector<1x32xf32>, vector<32x96xf32>, vector<1x96xf32> -> vector<1x96xf32>
    %121 = arith.addf %120, %57 : vector<1x96xf32>
    %122 = vector.extract_strided_slice %119 {offsets = [0, 0], sizes = [1, 32], strides = [1, 1]} : vector<1x96xf32> to vector<1x32xf32>
    %123 = vector.extract_strided_slice %121 {offsets = [0, 0], sizes = [1, 32], strides = [1, 1]} : vector<1x96xf32> to vector<1x32xf32>
    %124 = arith.addf %122, %123 : vector<1x32xf32>
    %125 = arith.negf %124 : vector<1x32xf32>
    %126 = math.exp %125 : vector<1x32xf32>
    %cst_44 = arith.constant 1.000000e+00 : f32
    %127 = vector.broadcast %cst_44 : f32 to vector<1x32xf32>
    %128 = arith.addf %127, %126 : vector<1x32xf32>
    %129 = arith.divf %127, %128 : vector<1x32xf32>
    %130 = vector.extract_strided_slice %119 {offsets = [0, 32], sizes = [1, 32], strides = [1, 1]} : vector<1x96xf32> to vector<1x32xf32>
    %131 = vector.extract_strided_slice %121 {offsets = [0, 32], sizes = [1, 32], strides = [1, 1]} : vector<1x96xf32> to vector<1x32xf32>
    %132 = arith.addf %130, %131 : vector<1x32xf32>
    %133 = arith.negf %132 : vector<1x32xf32>
    %134 = math.exp %133 : vector<1x32xf32>
    %cst_45 = arith.constant 1.000000e+00 : f32
    %135 = vector.broadcast %cst_45 : f32 to vector<1x32xf32>
    %136 = arith.addf %135, %134 : vector<1x32xf32>
    %137 = arith.divf %135, %136 : vector<1x32xf32>
    %138 = vector.extract_strided_slice %119 {offsets = [0, 64], sizes = [1, 32], strides = [1, 1]} : vector<1x96xf32> to vector<1x32xf32>
    %139 = vector.extract_strided_slice %121 {offsets = [0, 64], sizes = [1, 32], strides = [1, 1]} : vector<1x96xf32> to vector<1x32xf32>
    %140 = arith.mulf %129, %139 : vector<1x32xf32>
    %141 = arith.addf %138, %140 : vector<1x32xf32>
    %142 = math.tanh %141 : vector<1x32xf32>
    %cst_46 = arith.constant 1.000000e+00 : f32
    %143 = vector.broadcast %cst_46 : f32 to vector<1x32xf32>
    %144 = arith.subf %143, %137 : vector<1x32xf32>
    %145 = arith.mulf %144, %142 : vector<1x32xf32>
    %146 = arith.mulf %137, %117 : vector<1x32xf32>
    %147 = arith.addf %145, %146 : vector<1x32xf32>
    %c2 = arith.constant 2 : index
    %c0_47 = arith.constant 0 : index
    %148 = vector.load %arg8[%c2, %c0_47] : memref<6x32xf32, #tpu.memory_space<vmem>>, vector<1x32xf32>
    tpu.vector_store %arg8[%c2, %c0_47], %147 {strides = array<i32>} : memref<6x32xf32, #tpu.memory_space<vmem>>, vector<1x32xf32>,
    %149 = vector.extract_strided_slice %55 {offsets = [3, 0], sizes = [1, 96], strides = [1, 1]} : vector<6x96xf32> to vector<1x96xf32>
    %cst_48 = arith.constant dense<0.000000e+00> : vector<1x96xf32>
    %150 = tpu.matmul %147, %56, %cst_48 {dimension_numbers = #tpu.dot_dimension_numbers<[1], [0], [0], [1], [0, 0, 1, 1], [], []>} : vector<1x32xf32>, vector<32x96xf32>, vector<1x96xf32> -> vector<1x96xf32>
    %151 = arith.addf %150, %57 : vector<1x96xf32>
    %152 = vector.extract_strided_slice %149 {offsets = [0, 0], sizes = [1, 32], strides = [1, 1]} : vector<1x96xf32> to vector<1x32xf32>
    %153 = vector.extract_strided_slice %151 {offsets = [0, 0], sizes = [1, 32], strides = [1, 1]} : vector<1x96xf32> to vector<1x32xf32>
    %154 = arith.addf %152, %153 : vector<1x32xf32>
    %155 = arith.negf %154 : vector<1x32xf32>
    %156 = math.exp %155 : vector<1x32xf32>
    %cst_49 = arith.constant 1.000000e+00 : f32
    %157 = vector.broadcast %cst_49 : f32 to vector<1x32xf32>
    %158 = arith.addf %157, %156 : vector<1x32xf32>
    %159 = arith.divf %157, %158 : vector<1x32xf32>
    %160 = vector.extract_strided_slice %149 {offsets = [0, 32], sizes = [1, 32], strides = [1, 1]} : vector<1x96xf32> to vector<1x32xf32>
    %161 = vector.extract_strided_slice %151 {offsets = [0, 32], sizes = [1, 32], strides = [1, 1]} : vector<1x96xf32> to vector<1x32xf32>
    %162 = arith.addf %160, %161 : vector<1x32xf32>
    %163 = arith.negf %162 : vector<1x32xf32>
    %164 = math.exp %163 : vector<1x32xf32>
    %cst_50 = arith.constant 1.000000e+00 : f32
    %165 = vector.broadcast %cst_50 : f32 to vector<1x32xf32>
    %166 = arith.addf %165, %164 : vector<1x32xf32>
    %167 = arith.divf %165, %166 : vector<1x32xf32>
    %168 = vector.extract_strided_slice %149 {offsets = [0, 64], sizes = [1, 32], strides = [1, 1]} : vector<1x96xf32> to vector<1x32xf32>
    %169 = vector.extract_strided_slice %151 {offsets = [0, 64], sizes = [1, 32], strides = [1, 1]} : vector<1x96xf32> to vector<1x32xf32>
    %170 = arith.mulf %159, %169 : vector<1x32xf32>
    %171 = arith.addf %168, %170 : vector<1x32xf32>
    %172 = math.tanh %171 : vector<1x32xf32>
    %cst_51 = arith.constant 1.000000e+00 : f32
    %173 = vector.broadcast %cst_51 : f32 to vector<1x32xf32>
    %174 = arith.subf %173, %167 : vector<1x32xf32>
    %175 = arith.mulf %174, %172 : vector<1x32xf32>
    %176 = arith.mulf %167, %147 : vector<1x32xf32>
    %177 = arith.addf %175, %176 : vector<1x32xf32>
    %c3 = arith.constant 3 : index
    %c0_52 = arith.constant 0 : index
    %178 = vector.load %arg8[%c3, %c0_52] : memref<6x32xf32, #tpu.memory_space<vmem>>, vector<1x32xf32>
    tpu.vector_store %arg8[%c3, %c0_52], %177 {strides = array<i32>} : memref<6x32xf32, #tpu.memory_space<vmem>>, vector<1x32xf32>,
    %179 = vector.extract_strided_slice %55 {offsets = [4, 0], sizes = [1, 96], strides = [1, 1]} : vector<6x96xf32> to vector<1x96xf32>
    %cst_53 = arith.constant dense<0.000000e+00> : vector<1x96xf32>
    %180 = tpu.matmul %177, %56, %cst_53 {dimension_numbers = #tpu.dot_dimension_numbers<[1], [0], [0], [1], [0, 0, 1, 1], [], []>} : vector<1x32xf32>, vector<32x96xf32>, vector<1x96xf32> -> vector<1x96xf32>
    %181 = arith.addf %180, %57 : vector<1x96xf32>
    %182 = vector.extract_strided_slice %179 {offsets = [0, 0], sizes = [1, 32], strides = [1, 1]} : vector<1x96xf32> to vector<1x32xf32>
    %183 = vector.extract_strided_slice %181 {offsets = [0, 0], sizes = [1, 32], strides = [1, 1]} : vector<1x96xf32> to vector<1x32xf32>
    %184 = arith.addf %182, %183 : vector<1x32xf32>
    %185 = arith.negf %184 : vector<1x32xf32>
    %186 = math.exp %185 : vector<1x32xf32>
    %cst_54 = arith.constant 1.000000e+00 : f32
    %187 = vector.broadcast %cst_54 : f32 to vector<1x32xf32>
    %188 = arith.addf %187, %186 : vector<1x32xf32>
    %189 = arith.divf %187, %188 : vector<1x32xf32>
    %190 = vector.extract_strided_slice %179 {offsets = [0, 32], sizes = [1, 32], strides = [1, 1]} : vector<1x96xf32> to vector<1x32xf32>
    %191 = vector.extract_strided_slice %181 {offsets = [0, 32], sizes = [1, 32], strides = [1, 1]} : vector<1x96xf32> to vector<1x32xf32>
    %192 = arith.addf %190, %191 : vector<1x32xf32>
    %193 = arith.negf %192 : vector<1x32xf32>
    %194 = math.exp %193 : vector<1x32xf32>
    %cst_55 = arith.constant 1.000000e+00 : f32
    %195 = vector.broadcast %cst_55 : f32 to vector<1x32xf32>
    %196 = arith.addf %195, %194 : vector<1x32xf32>
    %197 = arith.divf %195, %196 : vector<1x32xf32>
    %198 = vector.extract_strided_slice %179 {offsets = [0, 64], sizes = [1, 32], strides = [1, 1]} : vector<1x96xf32> to vector<1x32xf32>
    %199 = vector.extract_strided_slice %181 {offsets = [0, 64], sizes = [1, 32], strides = [1, 1]} : vector<1x96xf32> to vector<1x32xf32>
    %200 = arith.mulf %189, %199 : vector<1x32xf32>
    %201 = arith.addf %198, %200 : vector<1x32xf32>
    %202 = math.tanh %201 : vector<1x32xf32>
    %cst_56 = arith.constant 1.000000e+00 : f32
    %203 = vector.broadcast %cst_56 : f32 to vector<1x32xf32>
    %204 = arith.subf %203, %197 : vector<1x32xf32>
    %205 = arith.mulf %204, %202 : vector<1x32xf32>
    %206 = arith.mulf %197, %177 : vector<1x32xf32>
    %207 = arith.addf %205, %206 : vector<1x32xf32>
    %c4 = arith.constant 4 : index
    %c0_57 = arith.constant 0 : index
    %208 = vector.load %arg8[%c4, %c0_57] : memref<6x32xf32, #tpu.memory_space<vmem>>, vector<1x32xf32>
    tpu.vector_store %arg8[%c4, %c0_57], %207 {strides = array<i32>} : memref<6x32xf32, #tpu.memory_space<vmem>>, vector<1x32xf32>,
    %209 = vector.extract_strided_slice %55 {offsets = [5, 0], sizes = [1, 96], strides = [1, 1]} : vector<6x96xf32> to vector<1x96xf32>
    %cst_58 = arith.constant dense<0.000000e+00> : vector<1x96xf32>
    %210 = tpu.matmul %207, %56, %cst_58 {dimension_numbers = #tpu.dot_dimension_numbers<[1], [0], [0], [1], [0, 0, 1, 1], [], []>} : vector<1x32xf32>, vector<32x96xf32>, vector<1x96xf32> -> vector<1x96xf32>
    %211 = arith.addf %210, %57 : vector<1x96xf32>
    %212 = vector.extract_strided_slice %209 {offsets = [0, 0], sizes = [1, 32], strides = [1, 1]} : vector<1x96xf32> to vector<1x32xf32>
    %213 = vector.extract_strided_slice %211 {offsets = [0, 0], sizes = [1, 32], strides = [1, 1]} : vector<1x96xf32> to vector<1x32xf32>
    %214 = arith.addf %212, %213 : vector<1x32xf32>
    %215 = arith.negf %214 : vector<1x32xf32>
    %216 = math.exp %215 : vector<1x32xf32>
    %cst_59 = arith.constant 1.000000e+00 : f32
    %217 = vector.broadcast %cst_59 : f32 to vector<1x32xf32>
    %218 = arith.addf %217, %216 : vector<1x32xf32>
    %219 = arith.divf %217, %218 : vector<1x32xf32>
    %220 = vector.extract_strided_slice %209 {offsets = [0, 32], sizes = [1, 32], strides = [1, 1]} : vector<1x96xf32> to vector<1x32xf32>
    %221 = vector.extract_strided_slice %211 {offsets = [0, 32], sizes = [1, 32], strides = [1, 1]} : vector<1x96xf32> to vector<1x32xf32>
    %222 = arith.addf %220, %221 : vector<1x32xf32>
    %223 = arith.negf %222 : vector<1x32xf32>
    %224 = math.exp %223 : vector<1x32xf32>
    %cst_60 = arith.constant 1.000000e+00 : f32
    %225 = vector.broadcast %cst_60 : f32 to vector<1x32xf32>
    %226 = arith.addf %225, %224 : vector<1x32xf32>
    %227 = arith.divf %225, %226 : vector<1x32xf32>
    %228 = vector.extract_strided_slice %209 {offsets = [0, 64], sizes = [1, 32], strides = [1, 1]} : vector<1x96xf32> to vector<1x32xf32>
    %229 = vector.extract_strided_slice %211 {offsets = [0, 64], sizes = [1, 32], strides = [1, 1]} : vector<1x96xf32> to vector<1x32xf32>
    %230 = arith.mulf %219, %229 : vector<1x32xf32>
    %231 = arith.addf %228, %230 : vector<1x32xf32>
    %232 = math.tanh %231 : vector<1x32xf32>
    %cst_61 = arith.constant 1.000000e+00 : f32
    %233 = vector.broadcast %cst_61 : f32 to vector<1x32xf32>
    %234 = arith.subf %233, %227 : vector<1x32xf32>
    %235 = arith.mulf %234, %232 : vector<1x32xf32>
    %236 = arith.mulf %227, %207 : vector<1x32xf32>
    %237 = arith.addf %235, %236 : vector<1x32xf32>
    %c5 = arith.constant 5 : index
    %c0_62 = arith.constant 0 : index
    %238 = vector.load %arg8[%c5, %c0_62] : memref<6x32xf32, #tpu.memory_space<vmem>>, vector<1x32xf32>
    tpu.vector_store %arg8[%c5, %c0_62], %237 {strides = array<i32>} : memref<6x32xf32, #tpu.memory_space<vmem>>, vector<1x32xf32>,
    %c0_63 = arith.constant 0 : index
    %c0_64 = arith.constant 0 : index
    %239 = vector.load %arg8[%c0_63, %c0_64] : memref<6x32xf32, #tpu.memory_space<vmem>>, vector<6x32xf32>
    %c0_65 = arith.constant 0 : index
    %c640 = arith.constant 640 : index
    %240 = vector.load %arg2[%c0_65, %c640] : memref<32x768xf32, #tpu.memory_space<vmem>>, vector<32x16xf32>
    %cst_66 = arith.constant dense<0.000000e+00> : vector<6x16xf32>
    %241 = tpu.matmul %239, %240, %cst_66 {dimension_numbers = #tpu.dot_dimension_numbers<[1], [0], [0], [1], [0, 0, 1, 1], [], []>} : vector<6x32xf32>, vector<32x16xf32>, vector<6x16xf32> -> vector<6x16xf32>
    %c0_67 = arith.constant 0 : index
    %c640_68 = arith.constant 640 : index
    %242 = vector.load %arg3[%c0_67, %c640_68] : memref<1x1024xf32, #tpu.memory_space<vmem>>, vector<1x16xf32>
    %243 = vector.broadcast %242 : vector<1x16xf32> to vector<6x16xf32>
    %244 = arith.addf %241, %243 : vector<6x16xf32>
    %cst_69 = arith.constant dense<0xFF800000> : vector<6xf32>
    %245 = vector.multi_reduction <maximumf>, %244, %cst_69 [1] : vector<6x16xf32> to vector<6xf32>
    %246 = vector.shape_cast %245 : vector<6xf32> to vector<6x1xf32>
    %247 = vector.broadcast %246 : vector<6x1xf32> to vector<6x16xf32>
    %248 = arith.subf %244, %247 : vector<6x16xf32>
    %249 = math.exp %248 : vector<6x16xf32>
    %cst_70 = arith.constant dense<0.000000e+00> : vector<6xf32>
    %250 = vector.multi_reduction <add>, %249, %cst_70 [1] : vector<6x16xf32> to vector<6xf32>
    %251 = vector.shape_cast %250 : vector<6xf32> to vector<6x1xf32>
    %252 = math.log %251 : vector<6x1xf32>
    %c0_71 = arith.constant 0 : index
    %c0_72 = arith.constant 0 : index
    %253 = vector.load %arg6[%c0_71, %c0_72] : memref<6x10xf32, #tpu.memory_space<vmem>>, vector<6x10xf32>
    tpu.vector_store %arg6[%c0_71, %c0_72], %41 {strides = array<i32>} : memref<6x10xf32, #tpu.memory_space<vmem>>, vector<6x10xf32>,
    %254 = vector.broadcast %252 : vector<6x1xf32> to vector<6x16xf32>
    %255 = arith.subf %248, %254 : vector<6x16xf32>
    %c0_73 = arith.constant 0 : index
    %c0_74 = arith.constant 0 : index
    %256 = vector.load %arg5[%c0_73, %c0_74] : memref<6x16xf32, #tpu.memory_space<vmem>>, vector<6x16xf32>
    tpu.vector_store %arg5[%c0_73, %c0_74], %255 {strides = array<i32>} : memref<6x16xf32, #tpu.memory_space<vmem>>, vector<6x16xf32>,
    %c0_75 = arith.constant 0 : index
    %c0_76 = arith.constant 0 : index
    %257 = vector.load %arg7[%c0_75, %c0_76] : memref<1x32xf32, #tpu.memory_space<vmem>>, vector<1x32xf32>
    tpu.vector_store %arg7[%c0_75, %c0_76], %237 {strides = array<i32>} : memref<1x32xf32, #tpu.memory_space<vmem>>, vector<1x32xf32>,
    return
  }
}

</mosaic_0001>

<llo_original>
// kernel: tpu_custom_call.1
$region0: #{tpu_custom_call.1}
  #allocation0 [shape = 'u32[]', space=smem, size = 0x4, offset = 0x4, fixed_abs, tag = 'smem constant byte address 0x4 - core index']
  #allocation1 [shape = 'u32[72,128]{1,0:T(1,128)}', space=vmem, size = 0x9000, scoped, tag = 'internal scratch']
  #allocation2 [shape = 'f32[6,32]{1,0:T(8,128)}', space=vmem, size = 0x1000, scoped, tag = 'scratch operand']
  %s0 = inlined_call_operand.hbm [shape: f32[6,32], index: 0, kind: input, shape index: {}]
  %s1 = inlined_call_operand.hbm [shape: f32[10,32], index: 1, kind: input, shape index: {}]
  %s2 = inlined_call_operand.hbm [shape: f32[32,768], index: 2, kind: input, shape index: {}]
  %s3 = inlined_call_operand.hbm [shape: f32[1,1024], index: 3, kind: input, shape index: {}]
  %s4 = inlined_call_operand.vmem [shape: f32[1,32], index: 4, kind: input, shape index: {}]
  %s5 = inlined_call_operand.hbm [shape: f32[6,16], index: 5, kind: output, shape index: {0}]
  %s6 = inlined_call_operand.hbm [shape: f32[6,10], index: 6, kind: output, shape index: {1}]
  %s7 = inlined_call_operand.hbm [shape: f32[1,32], index: 7, kind: output, shape index: {2}]
  %8 = xla_tuple %s5, %s6, %s7
  %s9 = sld [smem:[#allocation0]]
  $region62: #{tpu_custom_call.1} parent=0
    _
  %s11 = ssub.s32 1, %s9
  %s12 = scalar_select 0, %s11, %s9
  $region1: #{tpu_custom_call.1} parent=0
    #allocation3 [shape = 'u8[4096]{0}', space=vmem, size = 0x1000, scoped, tag = 'input window, operand 0, single buffered']
    #allocation4 [shape = 's32[1]{0}', space=sflag, size = 0x4, scoped, tag = 'scoped memory for tpu_custom_call.1']
    #allocation5 [shape = 's32[1]{0}', space=sflag, size = 0x4, scoped, tag = 'scoped memory for tpu_custom_call.1']
    #allocation6 [shape = 'u8[8192]{0}', space=vmem, size = 0x2000, scoped, tag = 'input window, operand 1, single buffered']
    #allocation7 [shape = 's32[1]{0}', space=sflag, size = 0x4, scoped, tag = 'scoped memory for tpu_custom_call.1']
    #allocation8 [shape = 'u8[98304]{0}', space=vmem, size = 0x18000, scoped, tag = 'input window, operand 2, single buffered']
    #allocation9 [shape = 'u8[4096]{0}', space=vmem, size = 0x1000, scoped, tag = 'input window, operand 3, single buffered']
    #allocation10 [shape = 's32[1]{0}', space=sflag, size = 0x4, scoped, tag = 'scoped memory for tpu_custom_call.1']
    #allocation11 [shape = 'u8[4096]{0}', space=vmem, size = 0x1000, scoped, tag = 'output window, operand 0, single buffered']
    #allocation12 [shape = 'u8[4096]{0}', space=vmem, size = 0x1000, scoped, tag = 'output window, operand 1, single buffered']
    #allocation13 [shape = 's32[1]{0}', space=sflag, size = 0x4, scoped, tag = 'scoped memory for tpu_custom_call.1']
    #allocation14 [shape = 'u8[512]{0}', space=vmem, size = 0x400, scoped, tag = 'output window, operand 2, single buffered']
    %13 = vsyncpa [#allocation4], 0
    %14 = vsyncpa [#allocation7], 0
    %15 = vsyncpa [#allocation10], 0
    %16 = vsyncpa [#allocation5], 0
    %17 = vsyncpa [#allocation13], 0
    // Predicated region
    $region2: #{tpu_custom_call.1} parent=1 // pred_check
      _
    $region3: #{tpu_custom_call.1} parent=1 // pred_check_branch
      %19 = sbr.rel (0) target = $region5
    $region4: #{tpu_custom_call.1} parent=1 // pred_region
      %21 = vsyncadd [#allocation4], 0
      %s23 = sshll.u32 %s0, 4
      %s24 = int_to_ptr.hbm [resolvable:$true] %s23
      %s25 = sshll.u32 [#allocation3], 4
      %s26 = int_to_ptr.vmem [resolvable:$true] %s25
      %28 = dma.hbm_to_vmem [thread:$0]  %s24, 128, %s26, [#allocation4]
    $region5: #{tpu_custom_call.1} parent=1 // pred_fallthru
      _
    // Predicated region
    $region6: #{tpu_custom_call.1} parent=1 // pred_check
      _
    $region7: #{tpu_custom_call.1} parent=1 // pred_check_branch
      %30 = sbr.rel (0) target = $region9
    $region8: #{tpu_custom_call.1} parent=1 // pred_region
      %32 = vsyncadd [#allocation7], 0
      %s33 = sshll.u32 %s1, 4
      %s34 = int_to_ptr.hbm [resolvable:$true] %s33
      %s35 = sshll.u32 [#allocation6], 4
      %s36 = int_to_ptr.vmem [resolvable:$true] %s35
      %41 = dma.hbm_to_vmem [thread:$0]  %s34, 256, %s36, [#allocation7], 128, 128, 8
    $region9: #{tpu_custom_call.1} parent=1 // pred_fallthru
      _
    // Predicated region
    $region10: #{tpu_custom_call.1} parent=1 // pred_check
      _
    $region11: #{tpu_custom_call.1} parent=1 // pred_check_branch
      %43 = sbr.rel (0) target = $region13
    $region12: #{tpu_custom_call.1} parent=1 // pred_region
      %45 = vsyncadd [#allocation7], 0
      %s46 = sshll.u32 %s2, 4
      %s47 = int_to_ptr.hbm [resolvable:$true] %s46
      %s48 = sshll.u32 [#allocation8], 4
      %s49 = int_to_ptr.vmem [resolvable:$true] %s48
      %54 = dma.hbm_to_vmem [thread:$0]  %s47, 3072, %s49, [#allocation7], 768, 768, 48
    $region13: #{tpu_custom_call.1} parent=1 // pred_fallthru
      _
    // Predicated region
    $region14: #{tpu_custom_call.1} parent=1 // pred_check
      _
    $region15: #{tpu_custom_call.1} parent=1 // pred_check_branch
      %56 = sbr.rel (0) target = $region17
    $region16: #{tpu_custom_call.1} parent=1 // pred_region
      %58 = vsyncadd [#allocation10], 0
      %s60 = sshll.u32 %s3, 4
      %s61 = int_to_ptr.hbm [resolvable:$true] %s60
      %s62 = sshll.u32 [#allocation9], 4
      %s63 = int_to_ptr.vmem [resolvable:$true] %s62
      %65 = dma.hbm_to_vmem [thread:$0]  %s61, 128, %s63, [#allocation10]
    $region17: #{tpu_custom_call.1} parent=1 // pred_fallthru
      _
    // Predicated region
    $region18: #{tpu_custom_call.1} parent=1 // pred_check
      _
    $region19: #{tpu_custom_call.1} parent=1 // pred_check_branch
      %67 = sbr.rel (0) target = $region21
    $region20: #{tpu_custom_call.1} parent=1 // pred_region
      _
    $region21: #{tpu_custom_call.1} parent=1 // pred_fallthru
      _
    // Predicated region
    $region22: #{tpu_custom_call.1} parent=1 // pred_check
      _
    $region23: #{tpu_custom_call.1} parent=1 // pred_check_branch
      %69 = sbr.rel (0) target = $region25
    $region24: #{tpu_custom_call.1} parent=1 // pred_region
      %71 = dma.done [#allocation4], 128
    $region25: #{tpu_custom_call.1} parent=1 // pred_fallthru
      _
    // Predicated region
    $region26: #{tpu_custom_call.1} parent=1 // pred_check
      _
    $region27: #{tpu_custom_call.1} parent=1 // pred_check_branch
      %73 = sbr.rel (0) target = $region29
    $region28: #{tpu_custom_call.1} parent=1 // pred_region
      %75 = dma.done [#allocation7], 256
    $region29: #{tpu_custom_call.1} parent=1 // pred_fallthru
      _
    // Predicated region
    $region30: #{tpu_custom_call.1} parent=1 // pred_check
      _
    $region31: #{tpu_custom_call.1} parent=1 // pred_check_branch
      %77 = sbr.rel (0) target = $region33
    $region32: #{tpu_custom_call.1} parent=1 // pred_region
      %79 = dma.done [#allocation7], 3072
    $region33: #{tpu_custom_call.1} parent=1 // pred_fallthru
      _
    // Predicated region
    $region34: #{tpu_custom_call.1} parent=1 // pred_check
      _
    $region35: #{tpu_custom_call.1} parent=1 // pred_check_branch
      %81 = sbr.rel (0) target = $region37
    $region36: #{tpu_custom_call.1} parent=1 // pred_region
      %83 = dma.done [#allocation10], 128
    $region37: #{tpu_custom_call.1} parent=1 // pred_fallthru
      _
    %v84 = vld [vmem:[#allocation3] sm:$0x3f]
    %v85 = vld [vmem:[#allocation6] sm:$0xff]
    %v86 = vld [vmem:[#allocation6 + $0x8] sm:$0x3]
    %v87 = vld [vmem:[#allocation8] sm:$0xff]
    %v88 = vld [vmem:[#allocation8 + $0x30] sm:$0xff]
    %v89 = vld [vmem:[#allocation8 + $0x60] sm:$0xff]
    %v90 = vld [vmem:[#allocation8 + $0x90] sm:$0xff]
    %vm91 = vcmask 261120
    %v93 = vsel %vm91, %v84, 0
    %95 = vmatpush.msra.mxu0 0.0
    %96 = vmatpush.msra.mxu0 0.0
    %97 = vmatpush.msra.mxu0 0.0
    %98 = vmatpush.msra.mxu0 0.0
    %99 = vmatpush.msra.mxu0 0.0
    %100 = vmatpush.msra.mxu0 0.0
    %101 = vmatpush.msra.mxu0 0.0
    %102 = vmatpush.msra.mxu0 0.0
    %103 = vmatpush.msra.mxu0 0.0
    %104 = vmatpush.msra.mxu0 0.0
    %105 = vmatpush.msra.mxu0 0.0
    %106 = vmatpush.msra.mxu0 0.0
    %107 = vmatpush.msra.mxu0 %v90
    %108 = vmatpush.msra.mxu0 %v89
    %109 = vmatpush.msra.mxu0 %v88
    %110 = vmatpush.msra.mxu0 %v87
    %111 = vmatmul.f32.gmra.mxu0 %v93
    %v112 = vpop.f32.mrf.mxu0
    %v113 = vadd.f32 0.0, %v112
    %114 = vdwg.mxu0
    %v115 = vld [vmem:[#allocation9] sm:$0x1]
    %v117 = vperm.slane %v115, 0
    %v119 = vadd.f32 %v113, %v117
    %v120 = vld [vmem:[#allocation8 + $0x8] sm:$0xff]
    %v121 = vld [vmem:[#allocation8 + $0x38] sm:$0xff]
    %v122 = vld [vmem:[#allocation8 + $0x68] sm:$0xff]
    %v123 = vld [vmem:[#allocation8 + $0x98] sm:$0xff]
    %v124 = vld [vmem:[#allocation9 + $0x1] sm:$0x1]
    %v126 = vperm.slane %v124, 0
    %v129 = vsel %vm91, %v85, 0
    %v132 = vsel %vm91, %v86, 0
    %134 = vmatpush.msra.mxu0 0.0
    %135 = vmatpush.msra.mxu0 0.0
    %136 = vmatpush.msra.mxu0 0.0
    %137 = vmatpush.msra.mxu0 0.0
    %138 = vmatpush.msra.mxu0 0.0
    %139 = vmatpush.msra.mxu0 0.0
    %140 = vmatpush.msra.mxu0 0.0
    %141 = vmatpush.msra.mxu0 0.0
    %142 = vmatpush.msra.mxu0 0.0
    %143 = vmatpush.msra.mxu0 0.0
    %144 = vmatpush.msra.mxu0 0.0
    %145 = vmatpush.msra.mxu0 0.0
    %146 = vmatpush.msra.mxu0 %v123
    %147 = vmatpush.msra.mxu0 %v122
    %148 = vmatpush.msra.mxu0 %v121
    %149 = vmatpush.msra.mxu0 %v120
    %150 = vmatmul.f32.gmra.mxu0 %v129
    %v151 = vpop.f32.mrf.mxu0
    %v152 = vadd.f32 %v126, %v151
    %153 = vmatmul.f32.gmra.mxu0 %v132
    %v154 = vpop.f32.mrf.mxu0
    %v155 = vadd.f32 %v126, %v154
    %156 = vdwg.mxu0
    %v158 = vrot.slane %v119, 1
    %v159 = vrot.slane %v119, 2
    %v160 = vrot.slane %v119, 3
    %v161 = vrot.slane %v119, 4
    %v162 = vrot.slane %v119, 5
    %v163 = vperm.slane %v119, 0
    %v164 = vperm.slane %v158, 0
    %v165 = vperm.slane %v159, 0
    %v166 = vperm.slane %v160, 0
    %v167 = vperm.slane %v161, 0
    %v168 = vperm.slane %v162, 0
    %v175 = vadd.f32 %v163, %v152
    %v176 = vadd.f32 %v163, %v155
    %v177 = vadd.f32 %v164, %v152
    %v178 = vadd.f32 %v164, %v155
    %v179 = vadd.f32 %v165, %v152
    %v180 = vadd.f32 %v165, %v155
    %v181 = vadd.f32 %v166, %v152
    %v182 = vadd.f32 %v166, %v155
    %v183 = vadd.f32 %v167, %v152
    %v184 = vadd.f32 %v167, %v155
    %v185 = vadd.f32 %v168, %v152
    %v186 = vadd.f32 %v168, %v155
    %v187 = vtanh.pop %v175
    %v188 = vtanh.pop %v176
    %v189 = vtanh.pop %v177
    %v190 = vtanh.pop %v178
    %v191 = vtanh.pop %v179
    %v192 = vtanh.pop %v180
    %v193 = vtanh.pop %v181
    %v194 = vtanh.pop %v182
    %v195 = vtanh.pop %v183
    %v196 = vtanh.pop %v184
    %v197 = vtanh.pop %v185
    %v198 = vtanh.pop %v186
    %v199 = vld [vmem:[#allocation9 + $0x7] sm:$0x1]
    %v201 = vperm.slane %v199, 0
    %v203 = vmul.f32 %v187, %v201
    %v204 = vmul.f32 %v188, %v201
    %v205 = vmul.f32 %v189, %v201
    %v206 = vmul.f32 %v190, %v201
    %v207 = vmul.f32 %v191, %v201
    %v208 = vmul.f32 %v192, %v201
    %v209 = vmul.f32 %v193, %v201
    %v210 = vmul.f32 %v194, %v201
    %v211 = vmul.f32 %v195, %v201
    %v212 = vmul.f32 %v196, %v201
    %v213 = vmul.f32 %v197, %v201
    %v214 = vmul.f32 %v198, %v201
    %v215 = vsel %vm91, %v203, 0.0
    %216 = vadd.xlane.f32.xlu0 %v215
    %v217 = vpop.xlane.xlu0 %216
    %vm218 = vcmask 254976
    %v219 = vsel %vm218, %v204, 0.0
    %220 = vadd.xlane.f32.xlu0 %v219
    %v221 = vpop.xlane.xlu0 %220
    %v222 = vsel %vm91, %v205, 0.0
    %223 = vadd.xlane.f32.xlu0 %v222
    %v224 = vpop.xlane.xlu0 %223
    %v225 = vsel %vm218, %v206, 0.0
    %226 = vadd.xlane.f32.xlu0 %v225
    %v227 = vpop.xlane.xlu0 %226
    %v228 = vsel %vm91, %v207, 0.0
    %229 = vadd.xlane.f32.xlu0 %v228
    %v230 = vpop.xlane.xlu0 %229
    %v231 = vsel %vm218, %v208, 0.0
    %232 = vadd.xlane.f32.xlu0 %v231
    %v233 = vpop.xlane.xlu0 %232
    %v234 = vsel %vm91, %v209, 0.0
    %235 = vadd.xlane.f32.xlu0 %v234
    %v236 = vpop.xlane.xlu0 %235
    %v237 = vsel %vm218, %v210, 0.0
    %238 = vadd.xlane.f32.xlu0 %v237
    %v239 = vpop.xlane.xlu0 %238
    %v240 = vsel %vm91, %v211, 0.0
    %241 = vadd.xlane.f32.xlu0 %v240
    %v242 = vpop.xlane.xlu0 %241
    %v243 = vsel %vm218, %v212, 0.0
    %244 = vadd.xlane.f32.xlu0 %v243
    %v245 = vpop.xlane.xlu0 %244
    %v246 = vsel %vm91, %v213, 0.0
    %247 = vadd.xlane.f32.xlu0 %v246
    %v248 = vpop.xlane.xlu0 %247
    %v249 = vsel %vm218, %v214, 0.0
    %250 = vadd.xlane.f32.xlu0 %v249
    %v251 = vpop.xlane.xlu0 %250
    %v252 = vld [vmem:[#allocation9 + $0x6] sm:$0x1]
    %v254 = vperm.slane %v252, 0
    %255 = vset.pattern.permute.xlu0 0
    %256 = vperm.xlu0 %255, %v254
    %v257 = vpop.permute.xlu0 %256
    %v259 = vadd.f32 %v217, %v257
    %v260 = vadd.f32 %v221, %v257
    %v261 = vadd.f32 %v224, %v257
    %v262 = vadd.f32 %v227, %v257
    %v263 = vadd.f32 %v230, %v257
    %v264 = vadd.f32 %v233, %v257
    %v265 = vadd.f32 %v236, %v257
    %v266 = vadd.f32 %v239, %v257
    %v267 = vadd.f32 %v242, %v257
    %v268 = vadd.f32 %v245, %v257
    %v269 = vadd.f32 %v248, %v257
    %v270 = vadd.f32 %v251, %v257
    %v283 = vlaneseq
    %v284 = vand.u32 %v283, 127
    %v285 = vperm.slane %v259, %v284
    %v286 = vadd.s32 %v284, 4294967288
    %v287 = vperm.slane %v260, %v286
    %vm288 = vcmask 130112
    %v289 = vsel %vm288, %v287, %v285
    %v290 = vperm.slane %v261, %v284
    %v291 = vperm.slane %v262, %v286
    %v292 = vsel %vm288, %v291, %v290
    %v293 = vperm.slane %v263, %v284
    %v294 = vperm.slane %v264, %v286
    %v295 = vsel %vm288, %v294, %v293
    %v296 = vperm.slane %v265, %v284
    %v297 = vperm.slane %v266, %v286
    %v298 = vsel %vm288, %v297, %v296
    %v299 = vperm.slane %v267, %v284
    %v300 = vperm.slane %v268, %v286
    %v301 = vsel %vm288, %v300, %v299
    %v302 = vperm.slane %v269, %v284
    %v303 = vperm.slane %v270, %v286
    %v304 = vsel %vm288, %v303, %v302
    %vm305 = vcmask 1041409
    %v306 = vsel %vm305, %v292, %v289
    %vm307 = vcmask 1042434
    %v308 = vsel %vm307, %v295, %v306
    %vm309 = vcmask 1043459
    %v310 = vsel %vm309, %v298, %v308
    %vm311 = vcmask 1044484
    %v312 = vsel %vm311, %v301, %v310
    %vm313 = vcmask 1045509
    %v314 = vsel %vm313, %v304, %v312
    %vm316 = vcmask 78848
    %v317 = vsel %vm316, %v314, -inf
    %318 = vmax.xlane.f32.xlu0 %v317
    %v319 = vpop.xlane.xlu0 %318
    %v321 = vperm.slane %v319, 0
    %v322 = vperm.slane %v319, 1
    %v323 = vperm.slane %v319, 2
    %v324 = vperm.slane %v319, 3
    %v325 = vperm.slane %v319, 4
    %v326 = vperm.slane %v319, 5
    %v333 = vsub.f32 %v259, %v321
    %v334 = vsub.f32 %v260, %v321
    %v335 = vsub.f32 %v261, %v322
    %v336 = vsub.f32 %v262, %v322
    %v337 = vsub.f32 %v263, %v323
    %v338 = vsub.f32 %v264, %v323
    %v339 = vsub.f32 %v265, %v324
    %v340 = vsub.f32 %v266, %v324
    %v341 = vsub.f32 %v267, %v325
    %v342 = vsub.f32 %v268, %v325
    %v343 = vsub.f32 %v269, %v326
    %v344 = vsub.f32 %v270, %v326
    %v345 = vmul.f32 %v333, 1.442695
    %v346 = vpow.pop %v345
    %v347 = vmul.f32 %v334, 1.442695
    %v348 = vpow.pop %v347
    %v349 = vmul.f32 %v335, 1.442695
    %v350 = vpow.pop %v349
    %v351 = vmul.f32 %v336, 1.442695
    %v352 = vpow.pop %v351
    %v353 = vmul.f32 %v337, 1.442695
    %v354 = vpow.pop %v353
    %v355 = vmul.f32 %v338, 1.442695
    %v356 = vpow.pop %v355
    %v357 = vmul.f32 %v339, 1.442695
    %v358 = vpow.pop %v357
    %v359 = vmul.f32 %v340, 1.442695
    %v360 = vpow.pop %v359
    %v361 = vmul.f32 %v341, 1.442695
    %v362 = vpow.pop %v361
    %v363 = vmul.f32 %v342, 1.442695
    %v364 = vpow.pop %v363
    %v365 = vmul.f32 %v343, 1.442695
    %v366 = vpow.pop %v365
    %v367 = vmul.f32 %v344, 1.442695
    %v368 = vpow.pop %v367
    %381 = vset.pattern.permute.xlu0 0
    %382 = vperm.xlu0 %381, %v346
    %v383 = vpop.permute.xlu0 %382
    %384 = vset.pattern.permute.xlu0 0
    %385 = vperm.xlu0 %384, %v348
    %v386 = vpop.permute.xlu0 %385
    %387 = vset.pattern.permute.xlu0 0
    %388 = vperm.xlu0 %387, %v350
    %v389 = vpop.permute.xlu0 %388
    %390 = vset.pattern.permute.xlu0 0
    %391 = vperm.xlu0 %390, %v352
    %v392 = vpop.permute.xlu0 %391
    %393 = vset.pattern.permute.xlu0 0
    %394 = vperm.xlu0 %393, %v354
    %v395 = vpop.permute.xlu0 %394
    %396 = vset.pattern.permute.xlu0 0
    %397 = vperm.xlu0 %396, %v356
    %v398 = vpop.permute.xlu0 %397
    %399 = vset.pattern.permute.xlu0 0
    %400 = vperm.xlu0 %399, %v358
    %v401 = vpop.permute.xlu0 %400
    %402 = vset.pattern.permute.xlu0 0
    %403 = vperm.xlu0 %402, %v360
    %v404 = vpop.permute.xlu0 %403
    %405 = vset.pattern.permute.xlu0 0
    %406 = vperm.xlu0 %405, %v362
    %v407 = vpop.permute.xlu0 %406
    %408 = vset.pattern.permute.xlu0 0
    %409 = vperm.xlu0 %408, %v364
    %v410 = vpop.permute.xlu0 %409
    %411 = vset.pattern.permute.xlu0 0
    %412 = vperm.xlu0 %411, %v366
    %v413 = vpop.permute.xlu0 %412
    %414 = vset.pattern.permute.xlu0 0
    %415 = vperm.xlu0 %414, %v368
    %v416 = vpop.permute.xlu0 %415
    %v417 = vperm.slane %v383, %v284
    %v418 = vperm.slane %v386, %v286
    %v419 = vsel %vm288, %v418, %v417
    %v420 = vperm.slane %v389, %v284
    %v421 = vperm.slane %v392, %v286
    %v422 = vsel %vm288, %v421, %v420
    %v423 = vperm.slane %v395, %v284
    %v424 = vperm.slane %v398, %v286
    %v425 = vsel %vm288, %v424, %v423
    %v426 = vperm.slane %v401, %v284
    %v427 = vperm.slane %v404, %v286
    %v428 = vsel %vm288, %v427, %v426
    %v429 = vperm.slane %v407, %v284
    %v430 = vperm.slane %v410, %v286
    %v431 = vsel %vm288, %v430, %v429
    %v432 = vperm.slane %v413, %v284
    %v433 = vperm.slane %v416, %v286
    %v434 = vsel %vm288, %v433, %v432
    %v435 = vsel %vm305, %v422, %v419
    %v436 = vsel %vm307, %v425, %v435
    %v437 = vsel %vm309, %v428, %v436
    %v438 = vsel %vm311, %v431, %v437
    %v439 = vsel %vm313, %v434, %v438
    %v441 = vsel %vm316, %v439, 0.0
    %442 = vadd.xlane.f32.xlu0 %v441
    %v443 = vpop.xlane.xlu0 %442
    %v444 = vrcp.pop %v443
    %v445 = vmul.f32 %v443, %v444
    %v446 = vsub.f32 2.0, %v445
    %v447 = vmul.f32 %v444, %v446
    %v449 = vperm.slane %v447, 0
    %v450 = vperm.slane %v447, 1
    %v451 = vperm.slane %v447, 2
    %v452 = vperm.slane %v447, 3
    %v453 = vperm.slane %v447, 4
    %v454 = vperm.slane %v447, 5
    %v461 = vmul.f32 %v346, %v449
    %v462 = vmul.f32 %v348, %v449
    %v463 = vmul.f32 %v350, %v450
    %v464 = vmul.f32 %v352, %v450
    %v465 = vmul.f32 %v354, %v451
    %v466 = vmul.f32 %v356, %v451
    %v467 = vmul.f32 %v358, %v452
    %v468 = vmul.f32 %v360, %v452
    %v469 = vmul.f32 %v362, %v453
    %v470 = vmul.f32 %v364, %v453
    %v471 = vmul.f32 %v366, %v454
    %v472 = vmul.f32 %v368, %v454
    %485 = vset.pattern.permute.xlu0 0
    %486 = vperm.xlu0 %485, %v461
    %v487 = vpop.permute.xlu0 %486
    %488 = vset.pattern.permute.xlu0 0
    %489 = vperm.xlu0 %488, %v462
    %v490 = vpop.permute.xlu0 %489
    %491 = vset.pattern.permute.xlu0 0
    %492 = vperm.xlu0 %491, %v463
    %v493 = vpop.permute.xlu0 %492
    %494 = vset.pattern.permute.xlu0 0
    %495 = vperm.xlu0 %494, %v464
    %v496 = vpop.permute.xlu0 %495
    %497 = vset.pattern.permute.xlu0 0
    %498 = vperm.xlu0 %497, %v465
    %v499 = vpop.permute.xlu0 %498
    %500 = vset.pattern.permute.xlu0 0
    %501 = vperm.xlu0 %500, %v466
    %v502 = vpop.permute.xlu0 %501
    %503 = vset.pattern.permute.xlu0 0
    %504 = vperm.xlu0 %503, %v467
    %v505 = vpop.permute.xlu0 %504
    %506 = vset.pattern.permute.xlu0 0
    %507 = vperm.xlu0 %506, %v468
    %v508 = vpop.permute.xlu0 %507
    %509 = vset.pattern.permute.xlu0 0
    %510 = vperm.xlu0 %509, %v469
    %v511 = vpop.permute.xlu0 %510
    %512 = vset.pattern.permute.xlu0 0
    %513 = vperm.xlu0 %512, %v470
    %v514 = vpop.permute.xlu0 %513
    %515 = vset.pattern.permute.xlu0 0
    %516 = vperm.xlu0 %515, %v471
    %v517 = vpop.permute.xlu0 %516
    %518 = vset.pattern.permute.xlu0 0
    %519 = vperm.xlu0 %518, %v472
    %v520 = vpop.permute.xlu0 %519
    %v521 = vperm.slane %v487, %v284
    %v522 = vperm.slane %v490, %v286
    %v523 = vsel %vm288, %v522, %v521
    %v524 = vperm.slane %v493, %v284
    %v525 = vperm.slane %v496, %v286
    %v526 = vsel %vm288, %v525, %v524
    %v527 = vperm.slane %v499, %v284
    %v528 = vperm.slane %v502, %v286
    %v529 = vsel %vm288, %v528, %v527
    %v530 = vperm.slane %v505, %v284
    %v531 = vperm.slane %v508, %v286
    %v532 = vsel %vm288, %v531, %v530
    %v533 = vperm.slane %v511, %v284
    %v534 = vperm.slane %v514, %v286
    %v535 = vsel %vm288, %v534, %v533
    %v536 = vperm.slane %v517, %v284
    %v537 = vperm.slane %v520, %v286
    %v538 = vsel %vm288, %v537, %v536
    %v539 = vsel %vm305, %v526, %v523
    %v540 = vsel %vm307, %v529, %v539
    %v541 = vsel %vm309, %v532, %v540
    %v542 = vsel %vm311, %v535, %v541
    %v543 = vsel %vm313, %v538, %v542
    %vm544 = vcmask 80896
    %v545 = vsel %vm544, %v543, 0
    %vm547 = vcmask 1041408
    %v548 = vsel %vm547, %v86, 0
    %550 = vmatpush.msra.mxu0 0.0
    %551 = vmatpush.msra.mxu0 0.0
    %552 = vmatpush.msra.mxu0 0.0
    %553 = vmatpush.msra.mxu0 0.0
    %554 = vmatpush.msra.mxu0 0.0
    %555 = vmatpush.msra.mxu0 0.0
    %556 = vmatpush.msra.mxu0 0.0
    %557 = vmatpush.msra.mxu0 0.0
    %558 = vmatpush.msra.mxu0 0.0
    %559 = vmatpush.msra.mxu0 0.0
    %560 = vmatpush.msra.mxu0 0.0
    %561 = vmatpush.msra.mxu0 0.0
    %562 = vmatpush.msra.mxu0 0.0
    %563 = vmatpush.msra.mxu0 0.0
    %564 = vmatpush.msra.mxu0 %v548
    %565 = vmatpush.msra.mxu0 %v85
    %566 = vmatmul.f32.gmra.mxu0 %v545
    %v567 = vpop.f32.mrf.mxu0
    %v568 = vadd.f32 0.0, %v567
    %569 = vdwg.mxu0
    %v570 = vld [vmem:[#allocation8 + $0x10] sm:$0xff]
    %v571 = vld [vmem:[#allocation8 + $0x40] sm:$0xff]
    %v572 = vld [vmem:[#allocation8 + $0x70] sm:$0xff]
    %v573 = vld [vmem:[#allocation8 + $0xa0] sm:$0xff]
    %v575 = vsel %vm91, %v568, 0
    %577 = vmatpush.msra.mxu0 0.0
    %578 = vmatpush.msra.mxu0 0.0
    %579 = vmatpush.msra.mxu0 0.0
    %580 = vmatpush.msra.mxu0 0.0
    %581 = vmatpush.msra.mxu0 0.0
    %582 = vmatpush.msra.mxu0 0.0
    %583 = vmatpush.msra.mxu0 0.0
    %584 = vmatpush.msra.mxu0 0.0
    %585 = vmatpush.msra.mxu0 0.0
    %586 = vmatpush.msra.mxu0 0.0
    %587 = vmatpush.msra.mxu0 0.0
    %588 = vmatpush.msra.mxu0 0.0
    %589 = vmatpush.msra.mxu0 %v573
    %590 = vmatpush.msra.mxu0 %v572
    %591 = vmatpush.msra.mxu0 %v571
    %592 = vmatpush.msra.mxu0 %v570
    %593 = vmatmul.f32.gmra.mxu0 %v575
    %v594 = vpop.f32.mrf.mxu0
    %v595 = vadd.f32 0.0, %v594
    %596 = vdwg.mxu0
    %598 = vrot.lane.b32.xlu0 %v595, 32
    %v599 = vpop.permute.xlu0 %598
    %v601 = vadd.f32 %v113, %v599
    %v602 = vld [vmem:[#allocation9 + $0x2] sm:$0x1]
    %v604 = vperm.slane %v602, 0
    %605 = vrot.lane.b32.xlu0 %v604, 32
    %v606 = vpop.permute.xlu0 %605
    %v608 = vadd.f32 %v601, %v606
    %v609 = vmax.f32 %v608, 0.0
    %v610 = vld [vmem:[#allocation8 + $0x18] sm:$0xff]
    %v611 = vld [vmem:[#allocation8 + $0x48] sm:$0xff]
    %v612 = vld [vmem:[#allocation8 + $0x78] sm:$0xff]
    %v613 = vld [vmem:[#allocation8 + $0xa8] sm:$0xff]
    %v614 = vld [vmem:[#allocation9 + $0x3] sm:$0x1]
    %v616 = vperm.slane %v614, 0
    %619 = vrot.lane.b32.xlu0 %v609, 96
    %v620 = vpop.permute.xlu0 %619
    %v621 = vsel %vm91, %v620, 0
    %623 = vmatpush.msra.mxu0 0.0
    %624 = vmatpush.msra.mxu0 0.0
    %625 = vmatpush.msra.mxu0 0.0
    %626 = vmatpush.msra.mxu0 0.0
    %627 = vmatpush.msra.mxu0 0.0
    %628 = vmatpush.msra.mxu0 0.0
    %629 = vmatpush.msra.mxu0 0.0
    %630 = vmatpush.msra.mxu0 0.0
    %631 = vmatpush.msra.mxu0 0.0
    %632 = vmatpush.msra.mxu0 0.0
    %633 = vmatpush.msra.mxu0 0.0
    %634 = vmatpush.msra.mxu0 0.0
    %635 = vmatpush.msra.mxu0 %v613
    %636 = vmatpush.msra.mxu0 %v612
    %637 = vmatpush.msra.mxu0 %v611
    %638 = vmatpush.msra.mxu0 %v610
    %639 = vmatmul.f32.gmra.mxu0 %v621
    %v640 = vpop.f32.mrf.mxu0
    %v641 = vadd.f32 %v616, %v640
    %642 = vdwg.mxu0
    %v643 = vld [vmem:[#allocation8 + $0x20] sm:$0xff]
    %v644 = vld [vmem:[#allocation8 + $0x50] sm:$0xff]
    %v645 = vld [vmem:[#allocation8 + $0x80] sm:$0xff]
    %v646 = vld [vmem:[#allocation8 + $0xb0] sm:$0xff]
    %v647 = vld [vmem:[#allocation9 + $0x4] sm:$0x1]
    %v648 = vld [vmem:[%s4] sm:$0x1]
    %v650 = vsel %vm91, %v648, 0
    %652 = vmatpush.msra.mxu0 0.0
    %653 = vmatpush.msra.mxu0 0.0
    %654 = vmatpush.msra.mxu0 0.0
    %655 = vmatpush.msra.mxu0 0.0
    %656 = vmatpush.msra.mxu0 0.0
    %657 = vmatpush.msra.mxu0 0.0
    %658 = vmatpush.msra.mxu0 0.0
    %659 = vmatpush.msra.mxu0 0.0
    %660 = vmatpush.msra.mxu0 0.0
    %661 = vmatpush.msra.mxu0 0.0
    %662 = vmatpush.msra.mxu0 0.0
    %663 = vmatpush.msra.mxu0 0.0
    %664 = vmatpush.msra.mxu0 %v646
    %665 = vmatpush.msra.mxu0 %v645
    %666 = vmatpush.msra.mxu0 %v644
    %667 = vmatpush.msra.mxu0 %v643
    %668 = vmatmul.f32.gmra.mxu0 %v650
    %v669 = vpop.f32.mrf.mxu0
    %v670 = vadd.f32 %v647, %v669
    %671 = vdwg.mxu0
    %v672 = vadd.f32 %v641, %v670
    %v673 = vxor.u32 %v672, 2147483648
    %v674 = vmul.f32 %v673, 1.442695
    %v675 = vpow.pop %v674
    %v676 = vadd.f32 %v675, 1.0
    %v677 = vrcp.pop %v676
    %v678 = vmul.f32 %v676, %v677
    %v679 = vsub.f32 1.0, %v678
    %v680 = vmul.f32 %v677, %v679
    %v681 = vadd.f32 %v677, %v680
    %vm682 = vweird.f32 %v676
    %vm683 = vweird.f32 %v677
    %vm684 = vmor %vm682, %vm683
    %v685 = vsel %vm684, %v677, %v681
    %v686 = vand.u32 2147483647, %v676
    %vm687 = vcmp.eq.f32.partialorder %v686, 8.507059e+37
    %v688 = vand.u32 %v676, 2147483648
    %v689 = vor.u32 1.1754944e-38, %v688
    %v690 = vsel %vm687, %v689, %v685
    %v691 = vmul.f32 1.0, %v690
    %693 = vrot.lane.b32.xlu0 %v670, 64
    %v694 = vpop.permute.xlu0 %693
    %v696 = vmul.f32 %v691, %v694
    %698 = vrot.lane.b32.xlu0 %v696, 64
    %v699 = vpop.permute.xlu0 %698
    %v701 = vadd.f32 %v641, %v699
    %v702 = vtanh.pop %v701
    %v703 = vsub.f32 1.0, %v691
    %705 = vrot.lane.b32.xlu0 %v702, 96
    %v706 = vpop.permute.xlu0 %705
    %v708 = vmul.f32 %v703, %v706
    %v709 = vperm.slane %v648, 0
    %710 = vrot.lane.b32.xlu0 %v709, 32
    %v711 = vpop.permute.xlu0 %710
    %v713 = vmul.f32 %v691, %v711
    %v714 = vadd.f32 %v708, %v713
    %716 = vrot.lane.b32.xlu0 %v714, 96
    %v717 = vpop.permute.xlu0 %716
    %vm719 = vcmask 253952
    %720 = vst.msk [vmem:[#allocation2] sm:$0x1] %vm719, %v717
    %v721 = vsel %vm91, %v717, 0
    %723 = vmatpush.msra.mxu0 0.0
    %724 = vmatpush.msra.mxu0 0.0
    %725 = vmatpush.msra.mxu0 0.0
    %726 = vmatpush.msra.mxu0 0.0
    %727 = vmatpush.msra.mxu0 0.0
    %728 = vmatpush.msra.mxu0 0.0
    %729 = vmatpush.msra.mxu0 0.0
    %730 = vmatpush.msra.mxu0 0.0
    %731 = vmatpush.msra.mxu0 0.0
    %732 = vmatpush.msra.mxu0 0.0
    %733 = vmatpush.msra.mxu0 0.0
    %734 = vmatpush.msra.mxu0 0.0
    %735 = vmatpush.msra.mxu0 %v646
    %736 = vmatpush.msra.mxu0 %v645
    %737 = vmatpush.msra.mxu0 %v644
    %738 = vmatpush.msra.mxu0 %v643
    %739 = vmatmul.f32.gmra.mxu0 %v721
    %v740 = vpop.f32.mrf.mxu0
    %v741 = vadd.f32 %v647, %v740
    %742 = vdwg.mxu0
    %v744 = vrot.slane %v741, 7
    %v746 = vadd.f32 %v641, %v744
    %v747 = vxor.u32 %v746, 2147483648
    %v748 = vmul.f32 %v747, 1.442695
    %v749 = vpow.pop %v748
    %v750 = vadd.f32 %v749, 1.0
    %v751 = vrcp.pop %v750
    %v752 = vmul.f32 %v750, %v751
    %v753 = vsub.f32 1.0, %v752
    %v754 = vmul.f32 %v751, %v753
    %v755 = vadd.f32 %v751, %v754
    %vm756 = vweird.f32 %v750
    %vm757 = vweird.f32 %v751
    %vm758 = vmor %vm756, %vm757
    %v759 = vsel %vm758, %v751, %v755
    %v760 = vand.u32 2147483647, %v750
    %vm761 = vcmp.eq.f32.partialorder %v760, 8.507059e+37
    %v762 = vand.u32 %v750, 2147483648
    %v763 = vor.u32 1.1754944e-38, %v762
    %v764 = vsel %vm761, %v763, %v759
    %v765 = vmul.f32 1.0, %v764
    %766 = vrot.lane.b32.xlu0 %v744, 64
    %v767 = vpop.permute.xlu0 %766
    %v769 = vmul.f32 %v765, %v767
    %771 = vrot.lane.b32.xlu0 %v769, 64
    %v772 = vpop.permute.xlu0 %771
    %v774 = vadd.f32 %v641, %v772
    %v775 = vtanh.pop %v774
    %v776 = vsub.f32 1.0, %v765
    %778 = vrot.lane.b32.xlu0 %v775, 96
    %v779 = vpop.permute.xlu0 %778
    %v781 = vmul.f32 %v776, %v779
    %v782 = vrot.slane %v714, 7
    %v784 = vmul.f32 %v765, %v782
    %v785 = vadd.f32 %v781, %v784
    %787 = vrot.lane.b32.xlu0 %v785, 96
    %v788 = vpop.permute.xlu0 %787
    %vm790 = vcmask 254977
    %791 = vst.msk [vmem:[#allocation2] sm:$0x2] %vm790, %v788
    %v792 = vrot.slane %v785, 1
    %793 = vrot.lane.b32.xlu0 %v792, 96
    %v794 = vpop.permute.xlu0 %793
    %v795 = vsel %vm91, %v794, 0
    %797 = vmatpush.msra.mxu0 0.0
    %798 = vmatpush.msra.mxu0 0.0
    %799 = vmatpush.msra.mxu0 0.0
    %800 = vmatpush.msra.mxu0 0.0
    %801 = vmatpush.msra.mxu0 0.0
    %802 = vmatpush.msra.mxu0 0.0
    %803 = vmatpush.msra.mxu0 0.0
    %804 = vmatpush.msra.mxu0 0.0
    %805 = vmatpush.msra.mxu0 0.0
    %806 = vmatpush.msra.mxu0 0.0
    %807 = vmatpush.msra.mxu0 0.0
    %808 = vmatpush.msra.mxu0 0.0
    %809 = vmatpush.msra.mxu0 %v646
    %810 = vmatpush.msra.mxu0 %v645
    %811 = vmatpush.msra.mxu0 %v644
    %812 = vmatpush.msra.mxu0 %v643
    %813 = vmatmul.f32.gmra.mxu0 %v795
    %v814 = vpop.f32.mrf.mxu0
    %v815 = vadd.f32 %v647, %v814
    %816 = vdwg.mxu0
    %v818 = vrot.slane %v815, 6
    %v820 = vadd.f32 %v641, %v818
    %v821 = vxor.u32 %v820, 2147483648
    %v822 = vmul.f32 %v821, 1.442695
    %v823 = vpow.pop %v822
    %v824 = vadd.f32 %v823, 1.0
    %v825 = vrcp.pop %v824
    %v826 = vmul.f32 %v824, %v825
    %v827 = vsub.f32 1.0, %v826
    %v828 = vmul.f32 %v825, %v827
    %v829 = vadd.f32 %v825, %v828
    %vm830 = vweird.f32 %v824
    %vm831 = vweird.f32 %v825
    %vm832 = vmor %vm830, %vm831
    %v833 = vsel %vm832, %v825, %v829
    %v834 = vand.u32 2147483647, %v824
    %vm835 = vcmp.eq.f32.partialorder %v834, 8.507059e+37
    %v836 = vand.u32 %v824, 2147483648
    %v837 = vor.u32 1.1754944e-38, %v836
    %v838 = vsel %vm835, %v837, %v833
    %v839 = vmul.f32 1.0, %v838
    %840 = vrot.lane.b32.xlu0 %v818, 64
    %v841 = vpop.permute.xlu0 %840
    %v843 = vmul.f32 %v839, %v841
    %845 = vrot.lane.b32.xlu0 %v843, 64
    %v846 = vpop.permute.xlu0 %845
    %v848 = vadd.f32 %v641, %v846
    %v849 = vtanh.pop %v848
    %v850 = vsub.f32 1.0, %v839
    %852 = vrot.lane.b32.xlu0 %v849, 96
    %v853 = vpop.permute.xlu0 %852
    %v855 = vmul.f32 %v850, %v853
    %v856 = vrot.slane %v785, 7
    %v858 = vmul.f32 %v839, %v856
    %v859 = vadd.f32 %v855, %v858
    %861 = vrot.lane.b32.xlu0 %v859, 96
    %v862 = vpop.permute.xlu0 %861
    %vm864 = vcmask 256002
    %865 = vst.msk [vmem:[#allocation2] sm:$0x4] %vm864, %v862
    %v866 = vrot.slane %v859, 2
    %867 = vrot.lane.b32.xlu0 %v866, 96
    %v868 = vpop.permute.xlu0 %867
    %v869 = vsel %vm91, %v868, 0
    %871 = vmatpush.msra.mxu0 0.0
    %872 = vmatpush.msra.mxu0 0.0
    %873 = vmatpush.msra.mxu0 0.0
    %874 = vmatpush.msra.mxu0 0.0
    %875 = vmatpush.msra.mxu0 0.0
    %876 = vmatpush.msra.mxu0 0.0
    %877 = vmatpush.msra.mxu0 0.0
    %878 = vmatpush.msra.mxu0 0.0
    %879 = vmatpush.msra.mxu0 0.0
    %880 = vmatpush.msra.mxu0 0.0
    %881 = vmatpush.msra.mxu0 0.0
    %882 = vmatpush.msra.mxu0 0.0
    %883 = vmatpush.msra.mxu0 %v646
    %884 = vmatpush.msra.mxu0 %v645
    %885 = vmatpush.msra.mxu0 %v644
    %886 = vmatpush.msra.mxu0 %v643
    %887 = vmatmul.f32.gmra.mxu0 %v869
    %v888 = vpop.f32.mrf.mxu0
    %v889 = vadd.f32 %v647, %v888
    %890 = vdwg.mxu0
    %v892 = vrot.slane %v889, 5
    %v894 = vadd.f32 %v641, %v892
    %v895 = vxor.u32 %v894, 2147483648
    %v896 = vmul.f32 %v895, 1.442695
    %v897 = vpow.pop %v896
    %v898 = vadd.f32 %v897, 1.0
    %v899 = vrcp.pop %v898
    %v900 = vmul.f32 %v898, %v899
    %v901 = vsub.f32 1.0, %v900
    %v902 = vmul.f32 %v899, %v901
    %v903 = vadd.f32 %v899, %v902
    %vm904 = vweird.f32 %v898
    %vm905 = vweird.f32 %v899
    %vm906 = vmor %vm904, %vm905
    %v907 = vsel %vm906, %v899, %v903
    %v908 = vand.u32 2147483647, %v898
    %vm909 = vcmp.eq.f32.partialorder %v908, 8.507059e+37
    %v910 = vand.u32 %v898, 2147483648
    %v911 = vor.u32 1.1754944e-38, %v910
    %v912 = vsel %vm909, %v911, %v907
    %v913 = vmul.f32 1.0, %v912
    %914 = vrot.lane.b32.xlu0 %v892, 64
    %v915 = vpop.permute.xlu0 %914
    %v917 = vmul.f32 %v913, %v915
    %919 = vrot.lane.b32.xlu0 %v917, 64
    %v920 = vpop.permute.xlu0 %919
    %v922 = vadd.f32 %v641, %v920
    %v923 = vtanh.pop %v922
    %v924 = vsub.f32 1.0, %v913
    %926 = vrot.lane.b32.xlu0 %v923, 96
    %v927 = vpop.permute.xlu0 %926
    %v929 = vmul.f32 %v924, %v927
    %v930 = vrot.slane %v859, 7
    %v932 = vmul.f32 %v913, %v930
    %v933 = vadd.f32 %v929, %v932
    %935 = vrot.lane.b32.xlu0 %v933, 96
    %v936 = vpop.permute.xlu0 %935
    %vm938 = vcmask 257027
    %939 = vst.msk [vmem:[#allocation2] sm:$0x8] %vm938, %v936
    %v940 = vrot.slane %v933, 3
    %941 = vrot.lane.b32.xlu0 %v940, 96
    %v942 = vpop.permute.xlu0 %941
    %v943 = vsel %vm91, %v942, 0
    %945 = vmatpush.msra.mxu0 0.0
    %946 = vmatpush.msra.mxu0 0.0
    %947 = vmatpush.msra.mxu0 0.0
    %948 = vmatpush.msra.mxu0 0.0
    %949 = vmatpush.msra.mxu0 0.0
    %950 = vmatpush.msra.mxu0 0.0
    %951 = vmatpush.msra.mxu0 0.0
    %952 = vmatpush.msra.mxu0 0.0
    %953 = vmatpush.msra.mxu0 0.0
    %954 = vmatpush.msra.mxu0 0.0
    %955 = vmatpush.msra.mxu0 0.0
    %956 = vmatpush.msra.mxu0 0.0
    %957 = vmatpush.msra.mxu0 %v646
    %958 = vmatpush.msra.mxu0 %v645
    %959 = vmatpush.msra.mxu0 %v644
    %960 = vmatpush.msra.mxu0 %v643
    %961 = vmatmul.f32.gmra.mxu0 %v943
    %v962 = vpop.f32.mrf.mxu0
    %v963 = vadd.f32 %v647, %v962
    %964 = vdwg.mxu0
    %v966 = vrot.slane %v963, 4
    %v968 = vadd.f32 %v641, %v966
    %v969 = vxor.u32 %v968, 2147483648
    %v970 = vmul.f32 %v969, 1.442695
    %v971 = vpow.pop %v970
    %v972 = vadd.f32 %v971, 1.0
    %v973 = vrcp.pop %v972
    %v974 = vmul.f32 %v972, %v973
    %v975 = vsub.f32 1.0, %v974
    %v976 = vmul.f32 %v973, %v975
    %v977 = vadd.f32 %v973, %v976
    %vm978 = vweird.f32 %v972
    %vm979 = vweird.f32 %v973
    %vm980 = vmor %vm978, %vm979
    %v981 = vsel %vm980, %v973, %v977
    %v982 = vand.u32 2147483647, %v972
    %vm983 = vcmp.eq.f32.partialorder %v982, 8.507059e+37
    %v984 = vand.u32 %v972, 2147483648
    %v985 = vor.u32 1.1754944e-38, %v984
    %v986 = vsel %vm983, %v985, %v981
    %v987 = vmul.f32 1.0, %v986
    %988 = vrot.lane.b32.xlu0 %v966, 64
    %v989 = vpop.permute.xlu0 %988
    %v991 = vmul.f32 %v987, %v989
    %993 = vrot.lane.b32.xlu0 %v991, 64
    %v994 = vpop.permute.xlu0 %993
    %v996 = vadd.f32 %v641, %v994
    %v997 = vtanh.pop %v996
    %v998 = vsub.f32 1.0, %v987
    %1000 = vrot.lane.b32.xlu0 %v997, 96
    %v1001 = vpop.permute.xlu0 %1000
    %v1003 = vmul.f32 %v998, %v1001
    %v1004 = vrot.slane %v933, 7
    %v1006 = vmul.f32 %v987, %v1004
    %v1007 = vadd.f32 %v1003, %v1006
    %1009 = vrot.lane.b32.xlu0 %v1007, 96
    %v1010 = vpop.permute.xlu0 %1009
    %vm1012 = vcmask 258052
    %1013 = vst.msk [vmem:[#allocation2] sm:$0x10] %vm1012, %v1010
    %v1014 = vrot.slane %v1007, 4
    %1015 = vrot.lane.b32.xlu0 %v1014, 96
    %v1016 = vpop.permute.xlu0 %1015
    %v1017 = vsel %vm91, %v1016, 0
    %1019 = vmatpush.msra.mxu0 0.0
    %1020 = vmatpush.msra.mxu0 0.0
    %1021 = vmatpush.msra.mxu0 0.0
    %1022 = vmatpush.msra.mxu0 0.0
    %1023 = vmatpush.msra.mxu0 0.0
    %1024 = vmatpush.msra.mxu0 0.0
    %1025 = vmatpush.msra.mxu0 0.0
    %1026 = vmatpush.msra.mxu0 0.0
    %1027 = vmatpush.msra.mxu0 0.0
    %1028 = vmatpush.msra.mxu0 0.0
    %1029 = vmatpush.msra.mxu0 0.0
    %1030 = vmatpush.msra.mxu0 0.0
    %1031 = vmatpush.msra.mxu0 %v646
    %1032 = vmatpush.msra.mxu0 %v645
    %1033 = vmatpush.msra.mxu0 %v644
    %1034 = vmatpush.msra.mxu0 %v643
    %1035 = vmatmul.f32.gmra.mxu0 %v1017
    %v1036 = vpop.f32.mrf.mxu0
    %v1037 = vadd.f32 %v647, %v1036
    %1038 = vdwg.mxu0
    %v1040 = vrot.slane %v1037, 3
    %v1042 = vadd.f32 %v641, %v1040
    %v1043 = vxor.u32 %v1042, 2147483648
    %v1044 = vmul.f32 %v1043, 1.442695
    %v1045 = vpow.pop %v1044
    %v1046 = vadd.f32 %v1045, 1.0
    %v1047 = vrcp.pop %v1046
    %v1048 = vmul.f32 %v1046, %v1047
    %v1049 = vsub.f32 1.0, %v1048
    %v1050 = vmul.f32 %v1047, %v1049
    %v1051 = vadd.f32 %v1047, %v1050
    %vm1052 = vweird.f32 %v1046
    %vm1053 = vweird.f32 %v1047
    %vm1054 = vmor %vm1052, %vm1053
    %v1055 = vsel %vm1054, %v1047, %v1051
    %v1056 = vand.u32 2147483647, %v1046
    %vm1057 = vcmp.eq.f32.partialorder %v1056, 8.507059e+37
    %v1058 = vand.u32 %v1046, 2147483648
    %v1059 = vor.u32 1.1754944e-38, %v1058
    %v1060 = vsel %vm1057, %v1059, %v1055
    %v1061 = vmul.f32 1.0, %v1060
    %1062 = vrot.lane.b32.xlu0 %v1040, 64
    %v1063 = vpop.permute.xlu0 %1062
    %v1065 = vmul.f32 %v1061, %v1063
    %1067 = vrot.lane.b32.xlu0 %v1065, 64
    %v1068 = vpop.permute.xlu0 %1067
    %v1070 = vadd.f32 %v641, %v1068
    %v1071 = vtanh.pop %v1070
    %v1072 = vsub.f32 1.0, %v1061
    %1074 = vrot.lane.b32.xlu0 %v1071, 96
    %v1075 = vpop.permute.xlu0 %1074
    %v1077 = vmul.f32 %v1072, %v1075
    %v1078 = vrot.slane %v1007, 7
    %v1080 = vmul.f32 %v1061, %v1078
    %v1081 = vadd.f32 %v1077, %v1080
    %1083 = vrot.lane.b32.xlu0 %v1081, 96
    %v1084 = vpop.permute.xlu0 %1083
    %vm1086 = vcmask 259077
    %1087 = vst.msk [vmem:[#allocation2] sm:$0x20] %vm1086, %v1084
    %v1088 = vld [vmem:[#allocation2] sm:$0x3f]
    %v1089 = vld [vmem:[#allocation8 + $0x28] sm:$0xff]
    %v1090 = vld [vmem:[#allocation8 + $0x58] sm:$0xff]
    %v1091 = vld [vmem:[#allocation8 + $0x88] sm:$0xff]
    %v1092 = vld [vmem:[#allocation8 + $0xb8] sm:$0xff]
    %v1093 = vld [vmem:[#allocation9 + $0x5] sm:$0x1]
    %v1095 = vperm.slane %v1093, 0
    %v1098 = vsel %vm91, %v1088, 0
    %1100 = vmatpush.msra.mxu0 0.0
    %1101 = vmatpush.msra.mxu0 0.0
    %1102 = vmatpush.msra.mxu0 0.0
    %1103 = vmatpush.msra.mxu0 0.0
    %1104 = vmatpush.msra.mxu0 0.0
    %1105 = vmatpush.msra.mxu0 0.0
    %1106 = vmatpush.msra.mxu0 0.0
    %1107 = vmatpush.msra.mxu0 0.0
    %1108 = vmatpush.msra.mxu0 0.0
    %1109 = vmatpush.msra.mxu0 0.0
    %1110 = vmatpush.msra.mxu0 0.0
    %1111 = vmatpush.msra.mxu0 0.0
    %1112 = vmatpush.msra.mxu0 %v1092
    %1113 = vmatpush.msra.mxu0 %v1091
    %1114 = vmatpush.msra.mxu0 %v1090
    %1115 = vmatpush.msra.mxu0 %v1089
    %1116 = vmatmul.f32.gmra.mxu0 %v1098
    %v1117 = vpop.f32.mrf.mxu0
    %v1118 = vadd.f32 %v1095, %v1117
    %1119 = vdwg.mxu0
    %vm1120 = vcmask 128000
    %v1121 = vsel %vm1120, %v1118, -inf
    %1122 = vmax.xlane.f32.xlu0 %v1121
    %v1123 = vpop.xlane.xlu0 %1122
    %v1124 = vsub.f32 %v1118, %v1123
    %v1125 = vmul.f32 %v1124, 1.442695
    %v1126 = vpow.pop %v1125
    %v1127 = vsel %vm1120, %v1126, 0.0
    %1128 = vadd.xlane.f32.xlu0 %v1127
    %v1129 = vpop.xlane.xlu0 %1128
    %v1130 = vlog2.pop %v1129
    %v1131 = vmul.f32 %v1130, 0.6931472
    %1133 = vst.msk [vmem:[#allocation12] sm:$0x3f] %vm316, %v543
    %v1134 = vsub.f32 %v1124, %v1131
    %1135 = vst.msk [vmem:[#allocation11] sm:$0x3f] %vm1120, %v1134
    %1136 = vst.msk [vmem:[#allocation14 - $0x5] sm:$0x20] %vm1086, %v1084
    // Predicated region
    $region38: #{tpu_custom_call.1} parent=1 // pred_check
      _
    $region39: #{tpu_custom_call.1} parent=1 // pred_check_branch
      %1138 = sbr.rel (0) target = $region41
    $region40: #{tpu_custom_call.1} parent=1 // pred_region
      %1140 = vsyncadd [#allocation5], 0
      %s1142 = sshll.u32 [#allocation11], 4
      %s1143 = int_to_ptr.vmem [resolvable:$true] %s1142
      %s1144 = sshll.u32 %s5, 4
      %s1145 = int_to_ptr.hbm [resolvable:$true] %s1144
      %1147 = dma.vmem_to_hbm [thread:$0]  %s1143, 128, %s1145, [#allocation5]
    $region41: #{tpu_custom_call.1} parent=1 // pred_fallthru
      _
    // Predicated region
    $region42: #{tpu_custom_call.1} parent=1 // pred_check
      _
    $region43: #{tpu_custom_call.1} parent=1 // pred_check_branch
      %1149 = sbr.rel (0) target = $region45
    $region44: #{tpu_custom_call.1} parent=1 // pred_region
      %1151 = vsyncadd [#allocation13], 0
      %s1153 = sshll.u32 [#allocation12], 4
      %s1154 = int_to_ptr.vmem [resolvable:$true] %s1153
      %s1155 = sshll.u32 %s6, 4
      %s1156 = int_to_ptr.hbm [resolvable:$true] %s1155
      %1158 = dma.vmem_to_hbm [thread:$0]  %s1154, 128, %s1156, [#allocation13]
    $region45: #{tpu_custom_call.1} parent=1 // pred_fallthru
      _
    // Predicated region
    $region46: #{tpu_custom_call.1} parent=1 // pred_check
      _
    $region47: #{tpu_custom_call.1} parent=1 // pred_check_branch
      %1160 = sbr.rel (0) target = $region49
    $region48: #{tpu_custom_call.1} parent=1 // pred_region
      %1162 = vsyncadd [#allocation13], 0
      %s1164 = sshll.u32 [#allocation14], 4
      %s1165 = int_to_ptr.vmem [resolvable:$true] %s1164
      %s1166 = sshll.u32 %s7, 4
      %s1167 = int_to_ptr.hbm [resolvable:$true] %s1166
      %1169 = dma.vmem_to_hbm [thread:$0]  %s1165, 16, %s1167, [#allocation13]
    $region49: #{tpu_custom_call.1} parent=1 // pred_fallthru
      _
    // Predicated region
    $region50: #{tpu_custom_call.1} parent=1 // pred_check
      _
    $region51: #{tpu_custom_call.1} parent=1 // pred_check_branch
      %1171 = sbr.rel (0) target = $region53
    $region52: #{tpu_custom_call.1} parent=1 // pred_region
      %1173 = dma.done [#allocation5], 128
    $region53: #{tpu_custom_call.1} parent=1 // pred_fallthru
      _
    // Predicated region
    $region54: #{tpu_custom_call.1} parent=1 // pred_check
      _
    $region55: #{tpu_custom_call.1} parent=1 // pred_check_branch
      %1175 = sbr.rel (0) target = $region57
    $region56: #{tpu_custom_call.1} parent=1 // pred_region
      %1177 = dma.done [#allocation13], 128
    $region57: #{tpu_custom_call.1} parent=1 // pred_fallthru
      _
    // Predicated region
    $region58: #{tpu_custom_call.1} parent=1 // pred_check
      _
    $region59: #{tpu_custom_call.1} parent=1 // pred_check_branch
      %1179 = sbr.rel (0) target = $region61
    $region60: #{tpu_custom_call.1} parent=1 // pred_region
      %1181 = dma.done [#allocation13], 16
    $region61: #{tpu_custom_call.1} parent=1 // pred_fallthru
      _
    %1182 = vsyncpa [#allocation4], 1
    %1183 = vsyncpa [#allocation7], 1
    %1184 = vsyncpa [#allocation10], 1
    %1185 = vsyncpa [#allocation5], 1
    %1186 = vsyncpa [#allocation13], 1

</llo_original>
